<compile_context>
chip_gen: v7x
topology: tpu7x:2x2x1
jax: 0.10.0
libtpu: 0.0.40
codegen_flags: <defaults>
</compile_context>

<pallas_src>
import functools

import jax
import jax.numpy as jnp
from jax.experimental import pallas as pl
from jax.experimental.pallas import tpu as pltpu


def pe_kernel(x_ref, w_ref, b_ref, o_ref, *, num_freqs):
    """Fused frequency embedding + projection via per-chunk MXU accumulation.

    x_ref: (TMP, PD)          packed input rows (P original rows per packed row, PD = P*D)
    w_ref: (nparts, PD, PD)   bf16 block-diagonal-expanded projection weights (VMEM resident;
                              constant index_map -> not re-DMA'd per grid step)
    b_ref: (1, PD)            f32 bias tiled P times
    o_ref: (TMP, PD)          packed output rows
    """
    x = x_ref[...].astype(jnp.float32)

    def chunk_dot(v, k):
        # Cast only at the MXU boundary; accumulate in f32.
        return jnp.dot(v.astype(jnp.bfloat16), w_ref[k],
                       preferred_element_type=jnp.float32)

    # Chunk 0: identity part (+ bias, broadcast once).
    acc = chunk_dot(x, 0) + b_ref[...]

    # Frequency 2^0: the only two EUP transcendentals in the kernel.
    s = jnp.sin(x)
    c = jnp.cos(x)
    acc = acc + chunk_dot(s, 1) + chunk_dot(c, 2)

    # Higher octaves via the double-angle recurrence (f32 VPU work, overlaps the MXU).
    for i in range(1, num_freqs):
        s, c = 2.0 * s * c, c * c - s * s          # sin/cos of the doubled frequency
        acc = acc + chunk_dot(s, 2 * i + 1) + chunk_dot(c, 2 * i + 2)

    o_ref[...] = acc.astype(o_ref.dtype)           # lane-dense (TMP, PD) store


def make_packed_projection(w_t, b, *, d_model, multires, lane_width=128):
    """Precompute (once per weight set) the lane-packed block-diagonal projection weights.

    w_t: (E, D) = nn.Linear.weight.T ; b: (D,).
    Returns (w_big bf16 (nparts, PD, PD), b_big f32 (1, PD)).
    """
    D = d_model
    nparts = 1 + 2 * multires
    E = D * nparts
    assert w_t.shape == (E, D) and b.shape == (D,)

    P = lane_width // D if (D <= lane_width and lane_width % D == 0) else 1
    PD = P * D

    # Per chunk k: W_big[k] = kron(I_P, W_k), so each packed sub-row multiplies its own copy.
    w_chunks = w_t.reshape(nparts, D, D).astype(jnp.float32)
    eye_p = jnp.eye(P, dtype=jnp.float32)
    w_big = jnp.einsum('pq,kfo->kpfqo', eye_p, w_chunks).reshape(nparts, PD, PD)
    w_big = w_big.astype(jnp.bfloat16)             # MXU operand dtype; f32 accumulate in-kernel
    b_big = jnp.tile(b.astype(jnp.float32), P).reshape(1, PD)
    return w_big, b_big


def positional_encoding(x, w_big, b_big, *, multires=6, tm_rows=8192):
    """x: (B, S, D); w_big/b_big from make_packed_projection. Returns (B, S, D)."""
    B, S, D = x.shape
    nparts = 1 + 2 * multires
    PD = w_big.shape[-1]
    assert w_big.shape == (nparts, PD, PD) and b_big.shape == (1, PD) and PD % D == 0
    P = PD // D

    M = B * S
    x2 = x.reshape(M, D)                            # native dtype; kernel upcasts
    if M % P != 0:                                  # tiny pad (< P rows) only when required
        x2 = jnp.pad(x2, ((0, P - M % P), (0, 0)))
    Mp = x2.shape[0] // P
    xp = x2.reshape(Mp, PD)                         # contiguous reshape: free, lane-dense

    # Row tile: big enough to amortize ~0.35 us grid-step overhead, capped so the grid has
    # >= 2 steps when there's enough work (keeps both v7x TensorCores busy).
    tm_p_target = max(8, (tm_rows // P // 8) * 8)
    tm_p = min(tm_p_target, max(8, (((Mp + 1) // 2) + 7) // 8 * 8))
    grid_m = pl.cdiv(Mp, tm_p)                      # ragged last block handled by Pallas

    kernel = functools.partial(pe_kernel, num_freqs=multires)
    outp = pl.pallas_call(
        kernel,
        out_shape=jax.ShapeDtypeStruct((Mp, PD), x.dtype),
        grid_spec=pltpu.PrefetchScalarGridSpec(
            num_scalar_prefetch=0,
            grid=(grid_m,),
            in_specs=[
                pl.BlockSpec((tm_p, PD), lambda i: (i, 0)),             # packed input rows
                pl.BlockSpec((nparts, PD, PD), lambda i: (0, 0, 0)),    # weights, resident
                pl.BlockSpec((1, PD), lambda i: (0, 0)),                # bias, resident
            ],
            out_specs=pl.BlockSpec((tm_p, PD), lambda i: (i, 0)),
        ),
        compiler_params=pltpu.CompilerParams(
            dimension_semantics=("parallel",),       # row axis shards across TCs on v7x
            vmem_limit_bytes=32 * 1024 * 1024,       # ~11 MiB/tile at tm_p=2048; safe on all gens
        ),
    )(xp, w_big, b_big)

    out = outp.reshape(Mp * P, D)[:M]
    return out.reshape(B, S, D)


def reference(x, w_t, b, multires=6):
    """Pure-JAX f32 reference matching the PyTorch module semantics (true sin/cos)."""
    parts = [x]
    for i in range(multires):
        f = 2.0 ** i
        parts.append(jnp.sin(f * x))
        parts.append(jnp.cos(f * x))
    emb = jnp.concatenate(parts, axis=-1)
    return emb @ w_t + b


if __name__ == "__main__":
    B, S, D = 2, 8, 32          # batch, seq_len, d_model
    MULTIRES = 6
    E = D * (1 + 2 * MULTIRES)  # 416

    key = jax.random.PRNGKey(0)
    kx, kw, kb = jax.random.split(key, 3)

    x = jax.random.normal(kx, (B, S, D), dtype=jnp.float32)
    # nn.Linear(embed_dim, d_model) params: weight (d_model, embed_dim); pass transposed.
    bound = 1.0 / (E ** 0.5)
    w = jax.random.uniform(kw, (D, E), minval=-bound, maxval=bound, dtype=jnp.float32)
    b = jax.random.uniform(kb, (D,), minval=-bound, maxval=bound, dtype=jnp.float32)
    w_t = w.T  # (E, D)

    # Hoisted weight prep: done once per weight set, not per forward call.
    w_big, b_big = make_packed_projection(w_t, b, d_model=D, multires=MULTIRES)

    pe = jax.jit(functools.partial(positional_encoding, multires=MULTIRES))
    y = jax.block_until_ready(pe(x, w_big, b_big))

    y_ref = reference(x, w_t, b, multires=MULTIRES)
    assert y.shape == (B, S, D)
    max_err = float(jnp.max(jnp.abs(y - y_ref)))
    # Tolerance covers bf16 MXU operand rounding over K_eff=416 (expected |err| ~ 1e-3)
    # plus the f32 double-angle recurrence drift (~1e-5 at multires=6).
    assert jnp.allclose(y, y_ref, atol=5e-3, rtol=5e-3), f"mismatch vs reference, max err {max_err}"

    print("KERNEL_OK")
</pallas_src>

<mosaic_0001>
module attributes {stable_mosaic.version = 11 : i64} {
  func.func @pe_kernel(%arg0: i32, %arg1: memref<8x128xf32, #tpu.memory_space<vmem>>, %arg2: memref<13x128x128xbf16, #tpu.memory_space<vmem>>, %arg3: memref<1x128xf32, #tpu.memory_space<vmem>>, %arg4: memref<8x128xf32, #tpu.memory_space<vmem>>) attributes {dimension_semantics = [#tpu.dimension_semantics<parallel>], iteration_bounds = array<i64: 1>, scalar_prefetch = 0 : i64, scratch_operands = 0 : i64, tpu.core_type = #tpu.core_type<tc>, window_params = [{transform_indices = @transform_0, window_bounds = array<i64: 8, 128>}, {pipeline_mode = #tpu.pipeline_mode<synchronous>, transform_indices = @transform_1, window_bounds = array<i64: 13, 128, 128>}, {pipeline_mode = #tpu.pipeline_mode<synchronous>, transform_indices = @transform_2, window_bounds = array<i64: 1, 128>}, {transform_indices = @transform_3, window_bounds = array<i64: 8, 128>}]} {
    %c0 = arith.constant 0 : index
    %c0_0 = arith.constant 0 : index
    %0 = vector.load %arg1[%c0, %c0_0] : memref<8x128xf32, #tpu.memory_space<vmem>>, vector<8x128xf32>
    %1 = arith.truncf %0 : vector<8x128xf32> to vector<8x128xbf16>
    %c0_1 = arith.constant 0 : index
    %c0_2 = arith.constant 0 : index
    %c0_3 = arith.constant 0 : index
    %2 = vector.load %arg2[%c0_1, %c0_2, %c0_3] : memref<13x128x128xbf16, #tpu.memory_space<vmem>>, vector<1x128x128xbf16>
    %3 = vector.shape_cast %2 : vector<1x128x128xbf16> to vector<128x128xbf16>
    %cst = arith.constant dense<0.000000e+00> : vector<8x128xf32>
    %4 = tpu.matmul %1, %3, %cst {dimension_numbers = #tpu.dot_dimension_numbers<[1], [0], [0], [1], [0, 0, 1, 1], [], []>} : vector<8x128xbf16>, vector<128x128xbf16>, vector<8x128xf32> -> vector<8x128xf32>
    %c0_4 = arith.constant 0 : index
    %c0_5 = arith.constant 0 : index
    %5 = vector.load %arg3[%c0_4, %c0_5] : memref<1x128xf32, #tpu.memory_space<vmem>>, vector<1x128xf32>
    %6 = vector.broadcast %5 : vector<1x128xf32> to vector<8x128xf32>
    %7 = arith.addf %4, %6 : vector<8x128xf32>
    %8 = math.sin %0 : vector<8x128xf32>
    %9 = math.cos %0 : vector<8x128xf32>
    %10 = arith.truncf %8 : vector<8x128xf32> to vector<8x128xbf16>
    %c1 = arith.constant 1 : index
    %c0_6 = arith.constant 0 : index
    %c0_7 = arith.constant 0 : index
    %11 = vector.load %arg2[%c1, %c0_6, %c0_7] : memref<13x128x128xbf16, #tpu.memory_space<vmem>>, vector<1x128x128xbf16>
    %12 = vector.shape_cast %11 : vector<1x128x128xbf16> to vector<128x128xbf16>
    %cst_8 = arith.constant dense<0.000000e+00> : vector<8x128xf32>
    %13 = tpu.matmul %10, %12, %cst_8 {dimension_numbers = #tpu.dot_dimension_numbers<[1], [0], [0], [1], [0, 0, 1, 1], [], []>} : vector<8x128xbf16>, vector<128x128xbf16>, vector<8x128xf32> -> vector<8x128xf32>
    %14 = arith.addf %7, %13 : vector<8x128xf32>
    %15 = arith.truncf %9 : vector<8x128xf32> to vector<8x128xbf16>
    %c2 = arith.constant 2 : index
    %c0_9 = arith.constant 0 : index
    %c0_10 = arith.constant 0 : index
    %16 = vector.load %arg2[%c2, %c0_9, %c0_10] : memref<13x128x128xbf16, #tpu.memory_space<vmem>>, vector<1x128x128xbf16>
    %17 = vector.shape_cast %16 : vector<1x128x128xbf16> to vector<128x128xbf16>
    %cst_11 = arith.constant dense<0.000000e+00> : vector<8x128xf32>
    %18 = tpu.matmul %15, %17, %cst_11 {dimension_numbers = #tpu.dot_dimension_numbers<[1], [0], [0], [1], [0, 0, 1, 1], [], []>} : vector<8x128xbf16>, vector<128x128xbf16>, vector<8x128xf32> -> vector<8x128xf32>
    %19 = arith.addf %14, %18 : vector<8x128xf32>
    %cst_12 = arith.constant 2.000000e+00 : f32
    %20 = vector.broadcast %cst_12 : f32 to vector<8x128xf32>
    %21 = arith.mulf %20, %8 : vector<8x128xf32>
    %22 = arith.mulf %21, %9 : vector<8x128xf32>
    %23 = arith.mulf %9, %9 : vector<8x128xf32>
    %24 = arith.mulf %8, %8 : vector<8x128xf32>
    %25 = arith.subf %23, %24 : vector<8x128xf32>
    %26 = arith.truncf %22 : vector<8x128xf32> to vector<8x128xbf16>
    %c3 = arith.constant 3 : index
    %c0_13 = arith.constant 0 : index
    %c0_14 = arith.constant 0 : index
    %27 = vector.load %arg2[%c3, %c0_13, %c0_14] : memref<13x128x128xbf16, #tpu.memory_space<vmem>>, vector<1x128x128xbf16>
    %28 = vector.shape_cast %27 : vector<1x128x128xbf16> to vector<128x128xbf16>
    %cst_15 = arith.constant dense<0.000000e+00> : vector<8x128xf32>
    %29 = tpu.matmul %26, %28, %cst_15 {dimension_numbers = #tpu.dot_dimension_numbers<[1], [0], [0], [1], [0, 0, 1, 1], [], []>} : vector<8x128xbf16>, vector<128x128xbf16>, vector<8x128xf32> -> vector<8x128xf32>
    %30 = arith.addf %19, %29 : vector<8x128xf32>
    %31 = arith.truncf %25 : vector<8x128xf32> to vector<8x128xbf16>
    %c4 = arith.constant 4 : index
    %c0_16 = arith.constant 0 : index
    %c0_17 = arith.constant 0 : index
    %32 = vector.load %arg2[%c4, %c0_16, %c0_17] : memref<13x128x128xbf16, #tpu.memory_space<vmem>>, vector<1x128x128xbf16>
    %33 = vector.shape_cast %32 : vector<1x128x128xbf16> to vector<128x128xbf16>
    %cst_18 = arith.constant dense<0.000000e+00> : vector<8x128xf32>
    %34 = tpu.matmul %31, %33, %cst_18 {dimension_numbers = #tpu.dot_dimension_numbers<[1], [0], [0], [1], [0, 0, 1, 1], [], []>} : vector<8x128xbf16>, vector<128x128xbf16>, vector<8x128xf32> -> vector<8x128xf32>
    %35 = arith.addf %30, %34 : vector<8x128xf32>
    %cst_19 = arith.constant 2.000000e+00 : f32
    %36 = vector.broadcast %cst_19 : f32 to vector<8x128xf32>
    %37 = arith.mulf %36, %22 : vector<8x128xf32>
    %38 = arith.mulf %37, %25 : vector<8x128xf32>
    %39 = arith.mulf %25, %25 : vector<8x128xf32>
    %40 = arith.mulf %22, %22 : vector<8x128xf32>
    %41 = arith.subf %39, %40 : vector<8x128xf32>
    %42 = arith.truncf %38 : vector<8x128xf32> to vector<8x128xbf16>
    %c5 = arith.constant 5 : index
    %c0_20 = arith.constant 0 : index
    %c0_21 = arith.constant 0 : index
    %43 = vector.load %arg2[%c5, %c0_20, %c0_21] : memref<13x128x128xbf16, #tpu.memory_space<vmem>>, vector<1x128x128xbf16>
    %44 = vector.shape_cast %43 : vector<1x128x128xbf16> to vector<128x128xbf16>
    %cst_22 = arith.constant dense<0.000000e+00> : vector<8x128xf32>
    %45 = tpu.matmul %42, %44, %cst_22 {dimension_numbers = #tpu.dot_dimension_numbers<[1], [0], [0], [1], [0, 0, 1, 1], [], []>} : vector<8x128xbf16>, vector<128x128xbf16>, vector<8x128xf32> -> vector<8x128xf32>
    %46 = arith.addf %35, %45 : vector<8x128xf32>
    %47 = arith.truncf %41 : vector<8x128xf32> to vector<8x128xbf16>
    %c6 = arith.constant 6 : index
    %c0_23 = arith.constant 0 : index
    %c0_24 = arith.constant 0 : index
    %48 = vector.load %arg2[%c6, %c0_23, %c0_24] : memref<13x128x128xbf16, #tpu.memory_space<vmem>>, vector<1x128x128xbf16>
    %49 = vector.shape_cast %48 : vector<1x128x128xbf16> to vector<128x128xbf16>
    %cst_25 = arith.constant dense<0.000000e+00> : vector<8x128xf32>
    %50 = tpu.matmul %47, %49, %cst_25 {dimension_numbers = #tpu.dot_dimension_numbers<[1], [0], [0], [1], [0, 0, 1, 1], [], []>} : vector<8x128xbf16>, vector<128x128xbf16>, vector<8x128xf32> -> vector<8x128xf32>
    %51 = arith.addf %46, %50 : vector<8x128xf32>
    %cst_26 = arith.constant 2.000000e+00 : f32
    %52 = vector.broadcast %cst_26 : f32 to vector<8x128xf32>
    %53 = arith.mulf %52, %38 : vector<8x128xf32>
    %54 = arith.mulf %53, %41 : vector<8x128xf32>
    %55 = arith.mulf %41, %41 : vector<8x128xf32>
    %56 = arith.mulf %38, %38 : vector<8x128xf32>
    %57 = arith.subf %55, %56 : vector<8x128xf32>
    %58 = arith.truncf %54 : vector<8x128xf32> to vector<8x128xbf16>
    %c7 = arith.constant 7 : index
    %c0_27 = arith.constant 0 : index
    %c0_28 = arith.constant 0 : index
    %59 = vector.load %arg2[%c7, %c0_27, %c0_28] : memref<13x128x128xbf16, #tpu.memory_space<vmem>>, vector<1x128x128xbf16>
    %60 = vector.shape_cast %59 : vector<1x128x128xbf16> to vector<128x128xbf16>
    %cst_29 = arith.constant dense<0.000000e+00> : vector<8x128xf32>
    %61 = tpu.matmul %58, %60, %cst_29 {dimension_numbers = #tpu.dot_dimension_numbers<[1], [0], [0], [1], [0, 0, 1, 1], [], []>} : vector<8x128xbf16>, vector<128x128xbf16>, vector<8x128xf32> -> vector<8x128xf32>
    %62 = arith.addf %51, %61 : vector<8x128xf32>
    %63 = arith.truncf %57 : vector<8x128xf32> to vector<8x128xbf16>
    %c8 = arith.constant 8 : index
    %c0_30 = arith.constant 0 : index
    %c0_31 = arith.constant 0 : index
    %64 = vector.load %arg2[%c8, %c0_30, %c0_31] : memref<13x128x128xbf16, #tpu.memory_space<vmem>>, vector<1x128x128xbf16>
    %65 = vector.shape_cast %64 : vector<1x128x128xbf16> to vector<128x128xbf16>
    %cst_32 = arith.constant dense<0.000000e+00> : vector<8x128xf32>
    %66 = tpu.matmul %63, %65, %cst_32 {dimension_numbers = #tpu.dot_dimension_numbers<[1], [0], [0], [1], [0, 0, 1, 1], [], []>} : vector<8x128xbf16>, vector<128x128xbf16>, vector<8x128xf32> -> vector<8x128xf32>
    %67 = arith.addf %62, %66 : vector<8x128xf32>
    %cst_33 = arith.constant 2.000000e+00 : f32
    %68 = vector.broadcast %cst_33 : f32 to vector<8x128xf32>
    %69 = arith.mulf %68, %54 : vector<8x128xf32>
    %70 = arith.mulf %69, %57 : vector<8x128xf32>
    %71 = arith.mulf %57, %57 : vector<8x128xf32>
    %72 = arith.mulf %54, %54 : vector<8x128xf32>
    %73 = arith.subf %71, %72 : vector<8x128xf32>
    %74 = arith.truncf %70 : vector<8x128xf32> to vector<8x128xbf16>
    %c9 = arith.constant 9 : index
    %c0_34 = arith.constant 0 : index
    %c0_35 = arith.constant 0 : index
    %75 = vector.load %arg2[%c9, %c0_34, %c0_35] : memref<13x128x128xbf16, #tpu.memory_space<vmem>>, vector<1x128x128xbf16>
    %76 = vector.shape_cast %75 : vector<1x128x128xbf16> to vector<128x128xbf16>
    %cst_36 = arith.constant dense<0.000000e+00> : vector<8x128xf32>
    %77 = tpu.matmul %74, %76, %cst_36 {dimension_numbers = #tpu.dot_dimension_numbers<[1], [0], [0], [1], [0, 0, 1, 1], [], []>} : vector<8x128xbf16>, vector<128x128xbf16>, vector<8x128xf32> -> vector<8x128xf32>
    %78 = arith.addf %67, %77 : vector<8x128xf32>
    %79 = arith.truncf %73 : vector<8x128xf32> to vector<8x128xbf16>
    %c10 = arith.constant 10 : index
    %c0_37 = arith.constant 0 : index
    %c0_38 = arith.constant 0 : index
    %80 = vector.load %arg2[%c10, %c0_37, %c0_38] : memref<13x128x128xbf16, #tpu.memory_space<vmem>>, vector<1x128x128xbf16>
    %81 = vector.shape_cast %80 : vector<1x128x128xbf16> to vector<128x128xbf16>
    %cst_39 = arith.constant dense<0.000000e+00> : vector<8x128xf32>
    %82 = tpu.matmul %79, %81, %cst_39 {dimension_numbers = #tpu.dot_dimension_numbers<[1], [0], [0], [1], [0, 0, 1, 1], [], []>} : vector<8x128xbf16>, vector<128x128xbf16>, vector<8x128xf32> -> vector<8x128xf32>
    %83 = arith.addf %78, %82 : vector<8x128xf32>
    %cst_40 = arith.constant 2.000000e+00 : f32
    %84 = vector.broadcast %cst_40 : f32 to vector<8x128xf32>
    %85 = arith.mulf %84, %70 : vector<8x128xf32>
    %86 = arith.mulf %85, %73 : vector<8x128xf32>
    %87 = arith.mulf %73, %73 : vector<8x128xf32>
    %88 = arith.mulf %70, %70 : vector<8x128xf32>
    %89 = arith.subf %87, %88 : vector<8x128xf32>
    %90 = arith.truncf %86 : vector<8x128xf32> to vector<8x128xbf16>
    %c11 = arith.constant 11 : index
    %c0_41 = arith.constant 0 : index
    %c0_42 = arith.constant 0 : index
    %91 = vector.load %arg2[%c11, %c0_41, %c0_42] : memref<13x128x128xbf16, #tpu.memory_space<vmem>>, vector<1x128x128xbf16>
    %92 = vector.shape_cast %91 : vector<1x128x128xbf16> to vector<128x128xbf16>
    %cst_43 = arith.constant dense<0.000000e+00> : vector<8x128xf32>
    %93 = tpu.matmul %90, %92, %cst_43 {dimension_numbers = #tpu.dot_dimension_numbers<[1], [0], [0], [1], [0, 0, 1, 1], [], []>} : vector<8x128xbf16>, vector<128x128xbf16>, vector<8x128xf32> -> vector<8x128xf32>
    %94 = arith.addf %83, %93 : vector<8x128xf32>
    %95 = arith.truncf %89 : vector<8x128xf32> to vector<8x128xbf16>
    %c12 = arith.constant 12 : index
    %c0_44 = arith.constant 0 : index
    %c0_45 = arith.constant 0 : index
    %96 = vector.load %arg2[%c12, %c0_44, %c0_45] : memref<13x128x128xbf16, #tpu.memory_space<vmem>>, vector<1x128x128xbf16>
    %97 = vector.shape_cast %96 : vector<1x128x128xbf16> to vector<128x128xbf16>
    %cst_46 = arith.constant dense<0.000000e+00> : vector<8x128xf32>
    %98 = tpu.matmul %95, %97, %cst_46 {dimension_numbers = #tpu.dot_dimension_numbers<[1], [0], [0], [1], [0, 0, 1, 1], [], []>} : vector<8x128xbf16>, vector<128x128xbf16>, vector<8x128xf32> -> vector<8x128xf32>
    %99 = arith.addf %94, %98 : vector<8x128xf32>
    %c0_47 = arith.constant 0 : index
    %c0_48 = arith.constant 0 : index
    %100 = vector.load %arg4[%c0_47, %c0_48] : memref<8x128xf32, #tpu.memory_space<vmem>>, vector<8x128xf32>
    tpu.vector_store %arg4[%c0_47, %c0_48], %99 {strides = array<i32>} : memref<8x128xf32, #tpu.memory_space<vmem>>, vector<8x128xf32>,
    return
  }
  func.func @transform_0(%arg0: i32) -> (i32, i32) {
    %c0_i32 = arith.constant 0 : i32
    %c0_i32_0 = arith.constant 0 : i32
    return %arg0, %c0_i32 : i32, i32
  }
  func.func @transform_1(%arg0: i32) -> (i32, i32, i32) {
    %c0_i32 = arith.constant 0 : i32
    %c0_i32_0 = arith.constant 0 : i32
    %c0_i32_1 = arith.constant 0 : i32
    %c0_i32_2 = arith.constant 0 : i32
    return %c0_i32, %c0_i32_0, %c0_i32_1 : i32, i32, i32
  }
  func.func @transform_2(%arg0: i32) -> (i32, i32) {
    %c0_i32 = arith.constant 0 : i32
    %c0_i32_0 = arith.constant 0 : i32
    %c0_i32_1 = arith.constant 0 : i32
    return %c0_i32, %c0_i32_0 : i32, i32
  }
  func.func @transform_3(%arg0: i32) -> (i32, i32) {
    %c0_i32 = arith.constant 0 : i32
    %c0_i32_0 = arith.constant 0 : i32
    return %arg0, %c0_i32 : i32, i32
  }
}

</mosaic_0001>

<llo_original>
// kernel: positional_encoding.1
$region0: #{positional_encoding.1}
  #allocation0 [shape = 'u32[]', space=smem, size = 0x4, offset = 0x4, fixed_abs, tag = 'smem constant byte address 0x4 - core index']
  #allocation1 [shape = 'u32[144,128]{1,0:T(1,128)}', space=vmem, size = 0x12000, scoped, tag = 'internal scratch']
  %s0 = inlined_call_operand.vmem [shape: f32[4,128], index: 0, kind: input, shape index: {}]
  %s1 = inlined_call_operand.hbm [shape: bf16[13,128,128], index: 1, kind: input, shape index: {}]
  %s2 = inlined_call_operand.vmem [shape: f32[1,128], index: 2, kind: input, shape index: {}]
  %s3 = inlined_call_operand.vmem [shape: f32[4,128], index: 3, kind: output, shape index: {}]
  %s4 = sld [smem:[#allocation0]]
  $region56: #{positional_encoding.1} parent=0
    _
  %s6 = ssub.s32 1, %s4
  %s7 = scalar_select 0, %s6, %s4
  $region1: #{positional_encoding.1} parent=0
    #allocation2 [shape = 'u8[425984]{0}', space=vmem, size = 0x68000, scoped, tag = 'input window, operand 1, single buffered']
    #allocation3 [shape = 's32[1]{0}', space=sflag, size = 0x4, scoped, tag = 'scoped memory for positional_encoding.1']
    #allocation4 [shape = 'u8[4096]{0}', space=vmem, size = 0x1000, scoped, tag = 'output window, operand 0, single buffered']
    %8 = vsyncpa [#allocation3], 0
    // Predicated region
    $region2: #{positional_encoding.1} parent=1 // pred_check
      _
    $region3: #{positional_encoding.1} parent=1 // pred_check_branch
      %10 = sbr.rel (0) target = $region5
    $region4: #{positional_encoding.1} parent=1 // pred_region
      _
    $region5: #{positional_encoding.1} parent=1 // pred_fallthru
      _
    // Predicated region
    $region6: #{positional_encoding.1} parent=1 // pred_check
      _
    $region7: #{positional_encoding.1} parent=1 // pred_check_branch
      %12 = sbr.rel (0) target = $region9
    $region8: #{positional_encoding.1} parent=1 // pred_region
      %s14 = ssub.s32 13312, 13312
      %15 = vsyncadd [#allocation3], %s14
      %s16 = sshll.u32 [#allocation2], 4
      %s17 = int_to_ptr.vmem [resolvable:$true] %s16
      %22 = dma.hbm_to_vmem [thread:$0]  %s1, 13312, %s17, [#allocation3], 64, 64, 4
    $region9: #{positional_encoding.1} parent=1 // pred_fallthru
      _
    // Predicated region
    $region10: #{positional_encoding.1} parent=1 // pred_check
      _
    $region11: #{positional_encoding.1} parent=1 // pred_check_branch
      %24 = sbr.rel (0) target = $region13
    $region12: #{positional_encoding.1} parent=1 // pred_region
      _
    $region13: #{positional_encoding.1} parent=1 // pred_fallthru
      _
    // Predicated region
    $region14: #{positional_encoding.1} parent=1 // pred_check
      _
    $region15: #{positional_encoding.1} parent=1 // pred_check_branch
      %26 = sbr.rel (0) target = $region17
    $region16: #{positional_encoding.1} parent=1 // pred_region
      %27 = dma.done [#allocation3], 13312
    $region17: #{positional_encoding.1} parent=1 // pred_fallthru
      _
    %v29 = vld [vmem:[%s0] sm:$0xff]
    %v30 = vpack.c.bf16 %v29, %v29
    %v31 = vld [vmem:[#allocation2] sm:$0xf]
    %v32 = vld [vmem:[#allocation2 + $0x4] sm:$0xf]
    %v33 = vld [vmem:[#allocation2 + $0x8] sm:$0xf]
    %v34 = vld [vmem:[#allocation2 + $0xc] sm:$0xf]
    %v35 = vld [vmem:[#allocation2 + $0x10] sm:$0xf]
    %v36 = vld [vmem:[#allocation2 + $0x14] sm:$0xf]
    %v37 = vld [vmem:[#allocation2 + $0x18] sm:$0xf]
    %v38 = vld [vmem:[#allocation2 + $0x1c] sm:$0xf]
    %v39 = vld [vmem:[#allocation2 + $0x20] sm:$0xf]
    %v40 = vld [vmem:[#allocation2 + $0x24] sm:$0xf]
    %v41 = vld [vmem:[#allocation2 + $0x28] sm:$0xf]
    %v42 = vld [vmem:[#allocation2 + $0x2c] sm:$0xf]
    %v43 = vld [vmem:[#allocation2 + $0x30] sm:$0xf]
    %v44 = vld [vmem:[#allocation2 + $0x34] sm:$0xf]
    %v45 = vld [vmem:[#allocation2 + $0x38] sm:$0xf]
    %v46 = vld [vmem:[#allocation2 + $0x3c] sm:$0xf]
    %v47 = vld [vmem:[%s2] sm:$0x1]
    %v49 = vlaneseq
    %v50 = vshrl.u32 %v49, 7
    %v51 = vsub.s32 0, %v50
    %v52 = vrot.slane %v47, %v51
    %v70 = vunpack.c.l.b16 %v31
    %v71 = vunpack.c.l.b16 %v32
    %v72 = vunpack.c.l.b16 %v33
    %v73 = vunpack.c.l.b16 %v34
    %v74 = vunpack.c.l.b16 %v35
    %v75 = vunpack.c.l.b16 %v36
    %v76 = vunpack.c.l.b16 %v37
    %v77 = vunpack.c.l.b16 %v38
    %v78 = vunpack.c.l.b16 %v39
    %v79 = vunpack.c.l.b16 %v40
    %v80 = vunpack.c.l.b16 %v41
    %v81 = vunpack.c.l.b16 %v42
    %v82 = vunpack.c.l.b16 %v43
    %v83 = vunpack.c.l.b16 %v44
    %v84 = vunpack.c.l.b16 %v45
    %v85 = vunpack.c.l.b16 %v46
    %v86 = vpack.c.b16 %v71, %v70
    %v87 = vpack.c.b16 %v73, %v72
    %v88 = vpack.c.b16 %v75, %v74
    %v89 = vpack.c.b16 %v77, %v76
    %v90 = vpack.c.b16 %v79, %v78
    %v91 = vpack.c.b16 %v81, %v80
    %v92 = vpack.c.b16 %v83, %v82
    %v93 = vpack.c.b16 %v85, %v84
    %102 = vmatprep.subr.bf16.mxu0 0
    %103 = vmatpush1.bf16.msra.mxu0 %v86
    %104 = vmatprep.subr.bf16.mxu0 0
    %105 = vmatpush1.bf16.msra.mxu0 %v87
    %106 = vmatprep.subr.bf16.mxu0 0
    %107 = vmatpush1.bf16.msra.mxu0 %v88
    %108 = vmatprep.subr.bf16.mxu0 0
    %109 = vmatpush1.bf16.msra.mxu0 %v89
    %110 = vmatprep.subr.bf16.mxu0 0
    %111 = vmatpush1.bf16.msra.mxu0 %v90
    %112 = vmatprep.subr.bf16.mxu0 0
    %113 = vmatpush1.bf16.msra.mxu0 %v91
    %114 = vmatprep.subr.bf16.mxu0 0
    %115 = vmatpush1.bf16.msra.mxu0 %v92
    %116 = vmatprep.subr.bf16.mxu0 0
    %117 = vmatpush1.bf16.msra.mxu0 %v93
    %118 = vmatprep.subr.bf16.mxu0 0
    %119 = vmatpush1.bf16.msra.mxu0 0
    %120 = vmatprep.subr.bf16.mxu0 0
    %121 = vmatpush1.bf16.msra.mxu0 0
    %122 = vmatprep.subr.bf16.mxu0 0
    %123 = vmatpush1.bf16.msra.mxu0 0
    %124 = vmatprep.subr.bf16.mxu0 0
    %125 = vmatpush1.bf16.msra.mxu0 0
    %126 = vmatprep.subr.bf16.mxu0 0
    %127 = vmatpush1.bf16.msra.mxu0 0
    %128 = vmatprep.subr.bf16.mxu0 0
    %129 = vmatpush1.bf16.msra.mxu0 0
    %130 = vmatprep.subr.bf16.mxu0 0
    %131 = vmatpush1.bf16.msra.mxu0 0
    %132 = vmatprep.subr.bf16.mxu0 0
    %133 = vmatpush1.bf16.msra.mxu0 0
    %134 = vmatprep.mubr.bf16.mxu0 0
    %135 = vmatmul.mubr.bf16.gmra.mrb[0].mxu0 %v30
    %v136 = vpop.f32.mrb[0].mxu0
    %v137 = vadd.f32 %v52, %v136
    %v138 = vpop.f32.mrb[0].mxu0
    %v139 = vpop.f32.mrb[0].mxu0
    %v140 = vpop.f32.mrb[0].mxu0
    %141 = vdwg.mxu0
    %v142 = vand.u32 2147483647, %v29
    %vm143 = vcmp.le.f32.partialorder %v142, 0.7853982
    %vm144 = vcmp.lt.s32.totalorder %v29, 0
    %v145 = vand.u32 %v29, 2139095040
    %v146 = vshrl.u32 %v145, 23
    %v147 = vsub.s32 %v146, 127
    %v148 = vand.u32 2147483647, %v29
    %v149 = vand.u32 %v148, 8388607
    %v150 = vor.u32 %v149, 8388608
    %v151 = vsub.s32 0, %v150
    %v152 = vadd.s32 %v147, 1
    %vm153 = vcmp.gt.s32.totalorder %v152, 0
    %v154 = vsel %vm153, %v152, 0
    %v155 = vshrl.u32 %v154, 5
    %v156 = vand.u32 %v154, 31
    %v157 = vsub.s32 32, %v156
    %v158 = vshrl.u32 683565275, %v157
    %v159 = vshll.u32 683565275, %v156
    %v160 = vshrl.u32 2475754826, %v157
    %v161 = vor.u32 %v159, %v160
    %v162 = vshll.u32 2475754826, %v156
    %v163 = vshrl.u32 2131351028, %v157
    %v164 = vor.u32 %v162, %v163
    %v165 = vshll.u32 2131351028, %v156
    %v166 = vshrl.u32 2102212464, %v157
    %v167 = vor.u32 %v165, %v166
    %v168 = vshll.u32 2102212464, %v156
    %v169 = vshrl.u32 920167782, %v157
    %v170 = vor.u32 %v168, %v169
    %v171 = vshll.u32 920167782, %v156
    %v172 = vshrl.u32 1326507024, %v157
    %v173 = vor.u32 %v171, %v172
    %vm174 = vcmp.lt.s32.totalorder %v155, 1
    %vm175 = vcmp.lt.s32.totalorder %v155, 2
    %vm176 = vcmp.lt.s32.totalorder %v155, 3
    %vm177 = vcmp.lt.s32.totalorder %v155, 4
    %v178 = vsel %vm174, %v158, %v161
    %v179 = vsel %vm177, %v167, 2102212464
    %v180 = vsel %vm176, %v164, %v179
    %v181 = vsel %vm175, %v178, %v180
    %v182 = vsel %vm174, %v161, %v164
    %v183 = vsel %vm177, %v170, 920167782
    %v184 = vsel %vm176, %v167, %v183
    %v185 = vsel %vm175, %v182, %v184
    %v186 = vsel %vm174, %v164, %v167
    %v187 = vsel %vm177, %v173, 1326507024
    %v188 = vsel %vm176, %v170, %v187
    %v189 = vsel %vm175, %v186, %v188
    %v190 = vshll.u32 %v150, 8
    %v191 = vmul.u32.u64.compose %v190, %v189
    %v192 = vextract.low.u32 %v191
    %v193 = vextract.high.u32 %v191
    %v194 = vmul.u32.u64.compose %v190, %v185
    %v195 = vextract.low.u32 %v194
    %v196 = vextract.high.u32 %v194
    %v197 = vmul.u32 %v190, %v181
    %v198 = vadd.s32 %v193, %v195
    %vm199 = vc.u32 %v193, %v195
    %v200 = vadd.s32 %v196, 1
    %v201 = vsel %vm199, %v200, %v196
    %v202 = vadd.s32 %v197, %v201
    %v203 = vadd.s32 %v202, 536870912
    %v204 = vshrl.u32 %v203, 30
    %v205 = vshll.u32 %v204, 30
    %v206 = vsub.s32 %v202, %v205
    %vm207 = vcmp.lt.s32.totalorder %v206, 0
    %v208 = vsub.s32 0, %v206
    %v209 = vsel %vm207, %v208, %v206
    %v210 = vclz %v209
    %v211 = vsub.s32 %v210, 2
    %vm212 = vcmp.gt.s32.totalorder 0, %v211
    %v213 = vsel %vm212, 0, %v211
    %v214 = vsub.s32 32, %v213
    %v215 = vshll.u32 %v206, %v213
    %v216 = vshrl.u32 %v198, %v214
    %v217 = vor.u32 %v215, %v216
    %v218 = vsub.s32 4294967266, %v213
    %v219 = vadd.s32 %v218, 127
    %v220 = vshll.u32 %v219, 23
    %v221 = vor.u32 4788187, %v220
    %v222 = vand.u32 2147483647, %v221
    %v224 = vcvt.s32.f32 %v217
    %v225 = vmul.f32 %v224, %v222
    %v226 = vxor.u32 %v225, 2147483648
    %v227 = vsel %vm144, %v226, %v225
    %v228 = vsub.s32 4, %v204
    %v229 = vsel %vm144, %v228, %v204
    %v230 = vsel %vm143, %v29, %v227
    %v231 = vsel %vm143, 0, %v229
    %v232 = vcosq.f32.pop %v230
    %v233 = vsinq.f32.pop %v230
    %vm234 = vweird.f32 %v29
    %v235 = vadd.s32 %v231, 3
    %v236 = vand.u32 %v235, 3
    %vm237 = vcmp.lt.s32.totalorder %v236, 2
    %vm238 = vcmp.eq.s32.totalorder %v236, 0
    %v239 = vxor.u32 %v233, 2147483648
    %v240 = vsel %vm238, %v232, %v239
    %vm241 = vcmp.eq.s32.totalorder %v236, 2
    %v242 = vxor.u32 %v232, 2147483648
    %v243 = vsel %vm241, %v242, %v233
    %v244 = vsel %vm237, %v240, %v243
    %v245 = vsel %vm234, nan, %v244
    %v246 = vand.u32 2147483647, %v29
    %vm247 = vcmp.le.f32.partialorder %v246, 0.7853982
    %vm248 = vcmp.lt.s32.totalorder %v29, 0
    %v249 = vand.u32 %v29, 2139095040
    %v250 = vshrl.u32 %v249, 23
    %v251 = vsub.s32 %v250, 127
    %v252 = vand.u32 2147483647, %v29
    %v253 = vand.u32 %v252, 8388607
    %v254 = vor.u32 %v253, 8388608
    %v255 = vsub.s32 0, %v254
    %v256 = vadd.s32 %v251, 1
    %vm257 = vcmp.gt.s32.totalorder %v256, 0
    %v258 = vsel %vm257, %v256, 0
    %v259 = vshrl.u32 %v258, 5
    %v260 = vand.u32 %v258, 31
    %v261 = vsub.s32 32, %v260
    %v262 = vshrl.u32 683565275, %v261
    %v263 = vshll.u32 683565275, %v260
    %v264 = vshrl.u32 2475754826, %v261
    %v265 = vor.u32 %v263, %v264
    %v266 = vshll.u32 2475754826, %v260
    %v267 = vshrl.u32 2131351028, %v261
    %v268 = vor.u32 %v266, %v267
    %v269 = vshll.u32 2131351028, %v260
    %v270 = vshrl.u32 2102212464, %v261
    %v271 = vor.u32 %v269, %v270
    %v272 = vshll.u32 2102212464, %v260
    %v273 = vshrl.u32 920167782, %v261
    %v274 = vor.u32 %v272, %v273
    %v275 = vshll.u32 920167782, %v260
    %v276 = vshrl.u32 1326507024, %v261
    %v277 = vor.u32 %v275, %v276
    %vm278 = vcmp.lt.s32.totalorder %v259, 1
    %vm279 = vcmp.lt.s32.totalorder %v259, 2
    %vm280 = vcmp.lt.s32.totalorder %v259, 3
    %vm281 = vcmp.lt.s32.totalorder %v259, 4
    %v282 = vsel %vm278, %v262, %v265
    %v283 = vsel %vm281, %v271, 2102212464
    %v284 = vsel %vm280, %v268, %v283
    %v285 = vsel %vm279, %v282, %v284
    %v286 = vsel %vm278, %v265, %v268
    %v287 = vsel %vm281, %v274, 920167782
    %v288 = vsel %vm280, %v271, %v287
    %v289 = vsel %vm279, %v286, %v288
    %v290 = vsel %vm278, %v268, %v271
    %v291 = vsel %vm281, %v277, 1326507024
    %v292 = vsel %vm280, %v274, %v291
    %v293 = vsel %vm279, %v290, %v292
    %v294 = vshll.u32 %v254, 8
    %v295 = vmul.u32.u64.compose %v294, %v293
    %v296 = vextract.low.u32 %v295
    %v297 = vextract.high.u32 %v295
    %v298 = vmul.u32.u64.compose %v294, %v289
    %v299 = vextract.low.u32 %v298
    %v300 = vextract.high.u32 %v298
    %v301 = vmul.u32 %v294, %v285
    %v302 = vadd.s32 %v297, %v299
    %vm303 = vc.u32 %v297, %v299
    %v304 = vadd.s32 %v300, 1
    %v305 = vsel %vm303, %v304, %v300
    %v306 = vadd.s32 %v301, %v305
    %v307 = vadd.s32 %v306, 536870912
    %v308 = vshrl.u32 %v307, 30
    %v309 = vshll.u32 %v308, 30
    %v310 = vsub.s32 %v306, %v309
    %vm311 = vcmp.lt.s32.totalorder %v310, 0
    %v312 = vsub.s32 0, %v310
    %v313 = vsel %vm311, %v312, %v310
    %v314 = vclz %v313
    %v315 = vsub.s32 %v314, 2
    %vm316 = vcmp.gt.s32.totalorder 0, %v315
    %v317 = vsel %vm316, 0, %v315
    %v318 = vsub.s32 32, %v317
    %v319 = vshll.u32 %v310, %v317
    %v320 = vshrl.u32 %v302, %v318
    %v321 = vor.u32 %v319, %v320
    %v322 = vsub.s32 4294967266, %v317
    %v323 = vadd.s32 %v322, 127
    %v324 = vshll.u32 %v323, 23
    %v325 = vor.u32 4788187, %v324
    %v326 = vand.u32 2147483647, %v325
    %v328 = vcvt.s32.f32 %v321
    %v329 = vmul.f32 %v328, %v326
    %v330 = vxor.u32 %v329, 2147483648
    %v331 = vsel %vm248, %v330, %v329
    %v332 = vsub.s32 4, %v308
    %v333 = vsel %vm248, %v332, %v308
    %v334 = vsel %vm247, %v29, %v331
    %v335 = vsel %vm247, 0, %v333
    %v336 = vcosq.f32.pop %v334
    %v337 = vsinq.f32.pop %v334
    %vm338 = vweird.f32 %v29
    %v339 = vand.u32 %v335, 3
    %vm340 = vcmp.lt.s32.totalorder %v339, 2
    %vm341 = vcmp.eq.s32.totalorder %v339, 0
    %v342 = vxor.u32 %v337, 2147483648
    %v343 = vsel %vm341, %v336, %v342
    %vm344 = vcmp.eq.s32.totalorder %v339, 2
    %v345 = vxor.u32 %v336, 2147483648
    %v346 = vsel %vm344, %v345, %v337
    %v347 = vsel %vm340, %v343, %v346
    %v348 = vsel %vm338, nan, %v347
    %v349 = vpack.c.bf16 %v245, %v245
    %s350 = scalar_lea.vmem [#allocation2], 64
    %v351 = vld [vmem:[%s350] sm:$0xf]
    %v352 = vld [vmem:[%s350 + $0x4] sm:$0xf]
    %v353 = vld [vmem:[%s350 + $0x8] sm:$0xf]
    %v354 = vld [vmem:[%s350 + $0xc] sm:$0xf]
    %v355 = vld [vmem:[%s350 + $0x10] sm:$0xf]
    %v356 = vld [vmem:[%s350 + $0x14] sm:$0xf]
    %v357 = vld [vmem:[%s350 + $0x18] sm:$0xf]
    %v358 = vld [vmem:[%s350 + $0x1c] sm:$0xf]
    %v359 = vld [vmem:[%s350 + $0x20] sm:$0xf]
    %v360 = vld [vmem:[%s350 + $0x24] sm:$0xf]
    %v361 = vld [vmem:[%s350 + $0x28] sm:$0xf]
    %v362 = vld [vmem:[%s350 + $0x2c] sm:$0xf]
    %v363 = vld [vmem:[%s350 + $0x30] sm:$0xf]
    %v364 = vld [vmem:[%s350 + $0x34] sm:$0xf]
    %v365 = vld [vmem:[%s350 + $0x38] sm:$0xf]
    %v366 = vld [vmem:[%s350 + $0x3c] sm:$0xf]
    %v383 = vunpack.c.l.b16 %v351
    %v384 = vunpack.c.l.b16 %v352
    %v385 = vunpack.c.l.b16 %v353
    %v386 = vunpack.c.l.b16 %v354
    %v387 = vunpack.c.l.b16 %v355
    %v388 = vunpack.c.l.b16 %v356
    %v389 = vunpack.c.l.b16 %v357
    %v390 = vunpack.c.l.b16 %v358
    %v391 = vunpack.c.l.b16 %v359
    %v392 = vunpack.c.l.b16 %v360
    %v393 = vunpack.c.l.b16 %v361
    %v394 = vunpack.c.l.b16 %v362
    %v395 = vunpack.c.l.b16 %v363
    %v396 = vunpack.c.l.b16 %v364
    %v397 = vunpack.c.l.b16 %v365
    %v398 = vunpack.c.l.b16 %v366
    %v399 = vpack.c.b16 %v384, %v383
    %v400 = vpack.c.b16 %v386, %v385
    %v401 = vpack.c.b16 %v388, %v387
    %v402 = vpack.c.b16 %v390, %v389
    %v403 = vpack.c.b16 %v392, %v391
    %v404 = vpack.c.b16 %v394, %v393
    %v405 = vpack.c.b16 %v396, %v395
    %v406 = vpack.c.b16 %v398, %v397
    %415 = vmatprep.subr.bf16.mxu0 0
    %416 = vmatpush1.bf16.msra.mxu0 %v399
    %417 = vmatprep.subr.bf16.mxu0 0
    %418 = vmatpush1.bf16.msra.mxu0 %v400
    %419 = vmatprep.subr.bf16.mxu0 0
    %420 = vmatpush1.bf16.msra.mxu0 %v401
    %421 = vmatprep.subr.bf16.mxu0 0
    %422 = vmatpush1.bf16.msra.mxu0 %v402
    %423 = vmatprep.subr.bf16.mxu0 0
    %424 = vmatpush1.bf16.msra.mxu0 %v403
    %425 = vmatprep.subr.bf16.mxu0 0
    %426 = vmatpush1.bf16.msra.mxu0 %v404
    %427 = vmatprep.subr.bf16.mxu0 0
    %428 = vmatpush1.bf16.msra.mxu0 %v405
    %429 = vmatprep.subr.bf16.mxu0 0
    %430 = vmatpush1.bf16.msra.mxu0 %v406
    %431 = vmatprep.subr.bf16.mxu0 0
    %432 = vmatpush1.bf16.msra.mxu0 0
    %433 = vmatprep.subr.bf16.mxu0 0
    %434 = vmatpush1.bf16.msra.mxu0 0
    %435 = vmatprep.subr.bf16.mxu0 0
    %436 = vmatpush1.bf16.msra.mxu0 0
    %437 = vmatprep.subr.bf16.mxu0 0
    %438 = vmatpush1.bf16.msra.mxu0 0
    %439 = vmatprep.subr.bf16.mxu0 0
    %440 = vmatpush1.bf16.msra.mxu0 0
    %441 = vmatprep.subr.bf16.mxu0 0
    %442 = vmatpush1.bf16.msra.mxu0 0
    %443 = vmatprep.subr.bf16.mxu0 0
    %444 = vmatpush1.bf16.msra.mxu0 0
    %445 = vmatprep.subr.bf16.mxu0 0
    %446 = vmatpush1.bf16.msra.mxu0 0
    %447 = vmatprep.mubr.bf16.mxu0 0
    %448 = vmatmul.mubr.bf16.gmra.mrb[0].mxu0 %v349
    %v449 = vpop.f32.mrb[0].mxu0
    %v450 = vadd.f32 0.0, %v449
    %v451 = vpop.f32.mrb[0].mxu0
    %v452 = vpop.f32.mrb[0].mxu0
    %v453 = vpop.f32.mrb[0].mxu0
    %454 = vdwg.mxu0
    %v455 = vadd.f32 %v137, %v450
    %v456 = vpack.c.bf16 %v348, %v348
    %s457 = scalar_lea.vmem [#allocation2], 128
    %v458 = vld [vmem:[%s457] sm:$0xf]
    %v459 = vld [vmem:[%s457 + $0x4] sm:$0xf]
    %v460 = vld [vmem:[%s457 + $0x8] sm:$0xf]
    %v461 = vld [vmem:[%s457 + $0xc] sm:$0xf]
    %v462 = vld [vmem:[%s457 + $0x10] sm:$0xf]
    %v463 = vld [vmem:[%s457 + $0x14] sm:$0xf]
    %v464 = vld [vmem:[%s457 + $0x18] sm:$0xf]
    %v465 = vld [vmem:[%s457 + $0x1c] sm:$0xf]
    %v466 = vld [vmem:[%s457 + $0x20] sm:$0xf]
    %v467 = vld [vmem:[%s457 + $0x24] sm:$0xf]
    %v468 = vld [vmem:[%s457 + $0x28] sm:$0xf]
    %v469 = vld [vmem:[%s457 + $0x2c] sm:$0xf]
    %v470 = vld [vmem:[%s457 + $0x30] sm:$0xf]
    %v471 = vld [vmem:[%s457 + $0x34] sm:$0xf]
    %v472 = vld [vmem:[%s457 + $0x38] sm:$0xf]
    %v473 = vld [vmem:[%s457 + $0x3c] sm:$0xf]
    %v490 = vunpack.c.l.b16 %v458
    %v491 = vunpack.c.l.b16 %v459
    %v492 = vunpack.c.l.b16 %v460
    %v493 = vunpack.c.l.b16 %v461
    %v494 = vunpack.c.l.b16 %v462
    %v495 = vunpack.c.l.b16 %v463
    %v496 = vunpack.c.l.b16 %v464
    %v497 = vunpack.c.l.b16 %v465
    %v498 = vunpack.c.l.b16 %v466
    %v499 = vunpack.c.l.b16 %v467
    %v500 = vunpack.c.l.b16 %v468
    %v501 = vunpack.c.l.b16 %v469
    %v502 = vunpack.c.l.b16 %v470
    %v503 = vunpack.c.l.b16 %v471
    %v504 = vunpack.c.l.b16 %v472
    %v505 = vunpack.c.l.b16 %v473
    %v506 = vpack.c.b16 %v491, %v490
    %v507 = vpack.c.b16 %v493, %v492
    %v508 = vpack.c.b16 %v495, %v494
    %v509 = vpack.c.b16 %v497, %v496
    %v510 = vpack.c.b16 %v499, %v498
    %v511 = vpack.c.b16 %v501, %v500
    %v512 = vpack.c.b16 %v503, %v502
    %v513 = vpack.c.b16 %v505, %v504
    %522 = vmatprep.subr.bf16.mxu0 0
    %523 = vmatpush1.bf16.msra.mxu0 %v506
    %524 = vmatprep.subr.bf16.mxu0 0
    %525 = vmatpush1.bf16.msra.mxu0 %v507
    %526 = vmatprep.subr.bf16.mxu0 0
    %527 = vmatpush1.bf16.msra.mxu0 %v508
    %528 = vmatprep.subr.bf16.mxu0 0
    %529 = vmatpush1.bf16.msra.mxu0 %v509
    %530 = vmatprep.subr.bf16.mxu0 0
    %531 = vmatpush1.bf16.msra.mxu0 %v510
    %532 = vmatprep.subr.bf16.mxu0 0
    %533 = vmatpush1.bf16.msra.mxu0 %v511
    %534 = vmatprep.subr.bf16.mxu0 0
    %535 = vmatpush1.bf16.msra.mxu0 %v512
    %536 = vmatprep.subr.bf16.mxu0 0
    %537 = vmatpush1.bf16.msra.mxu0 %v513
    %538 = vmatprep.subr.bf16.mxu0 0
    %539 = vmatpush1.bf16.msra.mxu0 0
    %540 = vmatprep.subr.bf16.mxu0 0
    %541 = vmatpush1.bf16.msra.mxu0 0
    %542 = vmatprep.subr.bf16.mxu0 0
    %543 = vmatpush1.bf16.msra.mxu0 0
    %544 = vmatprep.subr.bf16.mxu0 0
    %545 = vmatpush1.bf16.msra.mxu0 0
    %546 = vmatprep.subr.bf16.mxu0 0
    %547 = vmatpush1.bf16.msra.mxu0 0
    %548 = vmatprep.subr.bf16.mxu0 0
    %549 = vmatpush1.bf16.msra.mxu0 0
    %550 = vmatprep.subr.bf16.mxu0 0
    %551 = vmatpush1.bf16.msra.mxu0 0
    %552 = vmatprep.subr.bf16.mxu0 0
    %553 = vmatpush1.bf16.msra.mxu0 0
    %554 = vmatprep.mubr.bf16.mxu0 0
    %555 = vmatmul.mubr.bf16.gmra.mrb[0].mxu0 %v456
    %v556 = vpop.f32.mrb[0].mxu0
    %v557 = vadd.f32 0.0, %v556
    %v558 = vpop.f32.mrb[0].mxu0
    %v559 = vpop.f32.mrb[0].mxu0
    %v560 = vpop.f32.mrb[0].mxu0
    %561 = vdwg.mxu0
    %v562 = vadd.f32 %v455, %v557
    %v563 = vmul.f32 %v245, 2.0
    %v564 = vmul.f32 %v563, %v348
    %v565 = vmul.f32 %v348, %v348
    %v566 = vmul.f32 %v245, %v245
    %v567 = vsub.f32 %v565, %v566
    %v568 = vpack.c.bf16 %v564, %v564
    %s569 = scalar_lea.vmem [#allocation2], 192
    %v570 = vld [vmem:[%s569] sm:$0xf]
    %v571 = vld [vmem:[%s569 + $0x4] sm:$0xf]
    %v572 = vld [vmem:[%s569 + $0x8] sm:$0xf]
    %v573 = vld [vmem:[%s569 + $0xc] sm:$0xf]
    %v574 = vld [vmem:[%s569 + $0x10] sm:$0xf]
    %v575 = vld [vmem:[%s569 + $0x14] sm:$0xf]
    %v576 = vld [vmem:[%s569 + $0x18] sm:$0xf]
    %v577 = vld [vmem:[%s569 + $0x1c] sm:$0xf]
    %v578 = vld [vmem:[%s569 + $0x20] sm:$0xf]
    %v579 = vld [vmem:[%s569 + $0x24] sm:$0xf]
    %v580 = vld [vmem:[%s569 + $0x28] sm:$0xf]
    %v581 = vld [vmem:[%s569 + $0x2c] sm:$0xf]
    %v582 = vld [vmem:[%s569 + $0x30] sm:$0xf]
    %v583 = vld [vmem:[%s569 + $0x34] sm:$0xf]
    %v584 = vld [vmem:[%s569 + $0x38] sm:$0xf]
    %v585 = vld [vmem:[%s569 + $0x3c] sm:$0xf]
    %v602 = vunpack.c.l.b16 %v570
    %v603 = vunpack.c.l.b16 %v571
    %v604 = vunpack.c.l.b16 %v572
    %v605 = vunpack.c.l.b16 %v573
    %v606 = vunpack.c.l.b16 %v574
    %v607 = vunpack.c.l.b16 %v575
    %v608 = vunpack.c.l.b16 %v576
    %v609 = vunpack.c.l.b16 %v577
    %v610 = vunpack.c.l.b16 %v578
    %v611 = vunpack.c.l.b16 %v579
    %v612 = vunpack.c.l.b16 %v580
    %v613 = vunpack.c.l.b16 %v581
    %v614 = vunpack.c.l.b16 %v582
    %v615 = vunpack.c.l.b16 %v583
    %v616 = vunpack.c.l.b16 %v584
    %v617 = vunpack.c.l.b16 %v585
    %v618 = vpack.c.b16 %v603, %v602
    %v619 = vpack.c.b16 %v605, %v604
    %v620 = vpack.c.b16 %v607, %v606
    %v621 = vpack.c.b16 %v609, %v608
    %v622 = vpack.c.b16 %v611, %v610
    %v623 = vpack.c.b16 %v613, %v612
    %v624 = vpack.c.b16 %v615, %v614
    %v625 = vpack.c.b16 %v617, %v616
    %634 = vmatprep.subr.bf16.mxu0 0
    %635 = vmatpush1.bf16.msra.mxu0 %v618
    %636 = vmatprep.subr.bf16.mxu0 0
    %637 = vmatpush1.bf16.msra.mxu0 %v619
    %638 = vmatprep.subr.bf16.mxu0 0
    %639 = vmatpush1.bf16.msra.mxu0 %v620
    %640 = vmatprep.subr.bf16.mxu0 0
    %641 = vmatpush1.bf16.msra.mxu0 %v621
    %642 = vmatprep.subr.bf16.mxu0 0
    %643 = vmatpush1.bf16.msra.mxu0 %v622
    %644 = vmatprep.subr.bf16.mxu0 0
    %645 = vmatpush1.bf16.msra.mxu0 %v623
    %646 = vmatprep.subr.bf16.mxu0 0
    %647 = vmatpush1.bf16.msra.mxu0 %v624
    %648 = vmatprep.subr.bf16.mxu0 0
    %649 = vmatpush1.bf16.msra.mxu0 %v625
    %650 = vmatprep.subr.bf16.mxu0 0
    %651 = vmatpush1.bf16.msra.mxu0 0
    %652 = vmatprep.subr.bf16.mxu0 0
    %653 = vmatpush1.bf16.msra.mxu0 0
    %654 = vmatprep.subr.bf16.mxu0 0
    %655 = vmatpush1.bf16.msra.mxu0 0
    %656 = vmatprep.subr.bf16.mxu0 0
    %657 = vmatpush1.bf16.msra.mxu0 0
    %658 = vmatprep.subr.bf16.mxu0 0
    %659 = vmatpush1.bf16.msra.mxu0 0
    %660 = vmatprep.subr.bf16.mxu0 0
    %661 = vmatpush1.bf16.msra.mxu0 0
    %662 = vmatprep.subr.bf16.mxu0 0
    %663 = vmatpush1.bf16.msra.mxu0 0
    %664 = vmatprep.subr.bf16.mxu0 0
    %665 = vmatpush1.bf16.msra.mxu0 0
    %666 = vmatprep.mubr.bf16.mxu0 0
    %667 = vmatmul.mubr.bf16.gmra.mrb[0].mxu0 %v568
    %v668 = vpop.f32.mrb[0].mxu0
    %v669 = vadd.f32 0.0, %v668
    %v670 = vpop.f32.mrb[0].mxu0
    %v671 = vpop.f32.mrb[0].mxu0
    %v672 = vpop.f32.mrb[0].mxu0
    %673 = vdwg.mxu0
    %v674 = vadd.f32 %v562, %v669
    %v675 = vpack.c.bf16 %v567, %v567
    %s676 = scalar_lea.vmem [#allocation2], 256
    %v677 = vld [vmem:[%s676] sm:$0xf]
    %v678 = vld [vmem:[%s676 + $0x4] sm:$0xf]
    %v679 = vld [vmem:[%s676 + $0x8] sm:$0xf]
    %v680 = vld [vmem:[%s676 + $0xc] sm:$0xf]
    %v681 = vld [vmem:[%s676 + $0x10] sm:$0xf]
    %v682 = vld [vmem:[%s676 + $0x14] sm:$0xf]
    %v683 = vld [vmem:[%s676 + $0x18] sm:$0xf]
    %v684 = vld [vmem:[%s676 + $0x1c] sm:$0xf]
    %v685 = vld [vmem:[%s676 + $0x20] sm:$0xf]
    %v686 = vld [vmem:[%s676 + $0x24] sm:$0xf]
    %v687 = vld [vmem:[%s676 + $0x28] sm:$0xf]
    %v688 = vld [vmem:[%s676 + $0x2c] sm:$0xf]
    %v689 = vld [vmem:[%s676 + $0x30] sm:$0xf]
    %v690 = vld [vmem:[%s676 + $0x34] sm:$0xf]
    %v691 = vld [vmem:[%s676 + $0x38] sm:$0xf]
    %v692 = vld [vmem:[%s676 + $0x3c] sm:$0xf]
    %v709 = vunpack.c.l.b16 %v677
    %v710 = vunpack.c.l.b16 %v678
    %v711 = vunpack.c.l.b16 %v679
    %v712 = vunpack.c.l.b16 %v680
    %v713 = vunpack.c.l.b16 %v681
    %v714 = vunpack.c.l.b16 %v682
    %v715 = vunpack.c.l.b16 %v683
    %v716 = vunpack.c.l.b16 %v684
    %v717 = vunpack.c.l.b16 %v685
    %v718 = vunpack.c.l.b16 %v686
    %v719 = vunpack.c.l.b16 %v687
    %v720 = vunpack.c.l.b16 %v688
    %v721 = vunpack.c.l.b16 %v689
    %v722 = vunpack.c.l.b16 %v690
    %v723 = vunpack.c.l.b16 %v691
    %v724 = vunpack.c.l.b16 %v692
    %v725 = vpack.c.b16 %v710, %v709
    %v726 = vpack.c.b16 %v712, %v711
    %v727 = vpack.c.b16 %v714, %v713
    %v728 = vpack.c.b16 %v716, %v715
    %v729 = vpack.c.b16 %v718, %v717
    %v730 = vpack.c.b16 %v720, %v719
    %v731 = vpack.c.b16 %v722, %v721
    %v732 = vpack.c.b16 %v724, %v723
    %741 = vmatprep.subr.bf16.mxu0 0
    %742 = vmatpush1.bf16.msra.mxu0 %v725
    %743 = vmatprep.subr.bf16.mxu0 0
    %744 = vmatpush1.bf16.msra.mxu0 %v726
    %745 = vmatprep.subr.bf16.mxu0 0
    %746 = vmatpush1.bf16.msra.mxu0 %v727
    %747 = vmatprep.subr.bf16.mxu0 0
    %748 = vmatpush1.bf16.msra.mxu0 %v728
    %749 = vmatprep.subr.bf16.mxu0 0
    %750 = vmatpush1.bf16.msra.mxu0 %v729
    %751 = vmatprep.subr.bf16.mxu0 0
    %752 = vmatpush1.bf16.msra.mxu0 %v730
    %753 = vmatprep.subr.bf16.mxu0 0
    %754 = vmatpush1.bf16.msra.mxu0 %v731
    %755 = vmatprep.subr.bf16.mxu0 0
    %756 = vmatpush1.bf16.msra.mxu0 %v732
    %757 = vmatprep.subr.bf16.mxu0 0
    %758 = vmatpush1.bf16.msra.mxu0 0
    %759 = vmatprep.subr.bf16.mxu0 0
    %760 = vmatpush1.bf16.msra.mxu0 0
    %761 = vmatprep.subr.bf16.mxu0 0
    %762 = vmatpush1.bf16.msra.mxu0 0
    %763 = vmatprep.subr.bf16.mxu0 0
    %764 = vmatpush1.bf16.msra.mxu0 0
    %765 = vmatprep.subr.bf16.mxu0 0
    %766 = vmatpush1.bf16.msra.mxu0 0
    %767 = vmatprep.subr.bf16.mxu0 0
    %768 = vmatpush1.bf16.msra.mxu0 0
    %769 = vmatprep.subr.bf16.mxu0 0
    %770 = vmatpush1.bf16.msra.mxu0 0
    %771 = vmatprep.subr.bf16.mxu0 0
    %772 = vmatpush1.bf16.msra.mxu0 0
    %773 = vmatprep.mubr.bf16.mxu0 0
    %774 = vmatmul.mubr.bf16.gmra.mrb[0].mxu0 %v675
    %v775 = vpop.f32.mrb[0].mxu0
    %v776 = vadd.f32 0.0, %v775
    %v777 = vpop.f32.mrb[0].mxu0
    %v778 = vpop.f32.mrb[0].mxu0
    %v779 = vpop.f32.mrb[0].mxu0
    %780 = vdwg.mxu0
    %v781 = vadd.f32 %v674, %v776
    %v782 = vmul.f32 %v564, 2.0
    %v783 = vmul.f32 %v782, %v567
    %v784 = vmul.f32 %v567, %v567
    %v785 = vmul.f32 %v564, %v564
    %v786 = vsub.f32 %v784, %v785
    %v787 = vpack.c.bf16 %v783, %v783
    %s788 = scalar_lea.vmem [#allocation2], 320
    %v789 = vld [vmem:[%s788] sm:$0xf]
    %v790 = vld [vmem:[%s788 + $0x4] sm:$0xf]
    %v791 = vld [vmem:[%s788 + $0x8] sm:$0xf]
    %v792 = vld [vmem:[%s788 + $0xc] sm:$0xf]
    %v793 = vld [vmem:[%s788 + $0x10] sm:$0xf]
    %v794 = vld [vmem:[%s788 + $0x14] sm:$0xf]
    %v795 = vld [vmem:[%s788 + $0x18] sm:$0xf]
    %v796 = vld [vmem:[%s788 + $0x1c] sm:$0xf]
    %v797 = vld [vmem:[%s788 + $0x20] sm:$0xf]
    %v798 = vld [vmem:[%s788 + $0x24] sm:$0xf]
    %v799 = vld [vmem:[%s788 + $0x28] sm:$0xf]
    %v800 = vld [vmem:[%s788 + $0x2c] sm:$0xf]
    %v801 = vld [vmem:[%s788 + $0x30] sm:$0xf]
    %v802 = vld [vmem:[%s788 + $0x34] sm:$0xf]
    %v803 = vld [vmem:[%s788 + $0x38] sm:$0xf]
    %v804 = vld [vmem:[%s788 + $0x3c] sm:$0xf]
    %v821 = vunpack.c.l.b16 %v789
    %v822 = vunpack.c.l.b16 %v790
    %v823 = vunpack.c.l.b16 %v791
    %v824 = vunpack.c.l.b16 %v792
    %v825 = vunpack.c.l.b16 %v793
    %v826 = vunpack.c.l.b16 %v794
    %v827 = vunpack.c.l.b16 %v795
    %v828 = vunpack.c.l.b16 %v796
    %v829 = vunpack.c.l.b16 %v797
    %v830 = vunpack.c.l.b16 %v798
    %v831 = vunpack.c.l.b16 %v799
    %v832 = vunpack.c.l.b16 %v800
    %v833 = vunpack.c.l.b16 %v801
    %v834 = vunpack.c.l.b16 %v802
    %v835 = vunpack.c.l.b16 %v803
    %v836 = vunpack.c.l.b16 %v804
    %v837 = vpack.c.b16 %v822, %v821
    %v838 = vpack.c.b16 %v824, %v823
    %v839 = vpack.c.b16 %v826, %v825
    %v840 = vpack.c.b16 %v828, %v827
    %v841 = vpack.c.b16 %v830, %v829
    %v842 = vpack.c.b16 %v832, %v831
    %v843 = vpack.c.b16 %v834, %v833
    %v844 = vpack.c.b16 %v836, %v835
    %853 = vmatprep.subr.bf16.mxu0 0
    %854 = vmatpush1.bf16.msra.mxu0 %v837
    %855 = vmatprep.subr.bf16.mxu0 0
    %856 = vmatpush1.bf16.msra.mxu0 %v838
    %857 = vmatprep.subr.bf16.mxu0 0
    %858 = vmatpush1.bf16.msra.mxu0 %v839
    %859 = vmatprep.subr.bf16.mxu0 0
    %860 = vmatpush1.bf16.msra.mxu0 %v840
    %861 = vmatprep.subr.bf16.mxu0 0
    %862 = vmatpush1.bf16.msra.mxu0 %v841
    %863 = vmatprep.subr.bf16.mxu0 0
    %864 = vmatpush1.bf16.msra.mxu0 %v842
    %865 = vmatprep.subr.bf16.mxu0 0
    %866 = vmatpush1.bf16.msra.mxu0 %v843
    %867 = vmatprep.subr.bf16.mxu0 0
    %868 = vmatpush1.bf16.msra.mxu0 %v844
    %869 = vmatprep.subr.bf16.mxu0 0
    %870 = vmatpush1.bf16.msra.mxu0 0
    %871 = vmatprep.subr.bf16.mxu0 0
    %872 = vmatpush1.bf16.msra.mxu0 0
    %873 = vmatprep.subr.bf16.mxu0 0
    %874 = vmatpush1.bf16.msra.mxu0 0
    %875 = vmatprep.subr.bf16.mxu0 0
    %876 = vmatpush1.bf16.msra.mxu0 0
    %877 = vmatprep.subr.bf16.mxu0 0
    %878 = vmatpush1.bf16.msra.mxu0 0
    %879 = vmatprep.subr.bf16.mxu0 0
    %880 = vmatpush1.bf16.msra.mxu0 0
    %881 = vmatprep.subr.bf16.mxu0 0
    %882 = vmatpush1.bf16.msra.mxu0 0
    %883 = vmatprep.subr.bf16.mxu0 0
    %884 = vmatpush1.bf16.msra.mxu0 0
    %885 = vmatprep.mubr.bf16.mxu0 0
    %886 = vmatmul.mubr.bf16.gmra.mrb[0].mxu0 %v787
    %v887 = vpop.f32.mrb[0].mxu0
    %v888 = vadd.f32 0.0, %v887
    %v889 = vpop.f32.mrb[0].mxu0
    %v890 = vpop.f32.mrb[0].mxu0
    %v891 = vpop.f32.mrb[0].mxu0
    %892 = vdwg.mxu0
    %v893 = vadd.f32 %v781, %v888
    %v894 = vpack.c.bf16 %v786, %v786
    %s895 = scalar_lea.vmem [#allocation2], 384
    %v896 = vld [vmem:[%s895] sm:$0xf]
    %v897 = vld [vmem:[%s895 + $0x4] sm:$0xf]
    %v898 = vld [vmem:[%s895 + $0x8] sm:$0xf]
    %v899 = vld [vmem:[%s895 + $0xc] sm:$0xf]
    %v900 = vld [vmem:[%s895 + $0x10] sm:$0xf]
    %v901 = vld [vmem:[%s895 + $0x14] sm:$0xf]
    %v902 = vld [vmem:[%s895 + $0x18] sm:$0xf]
    %v903 = vld [vmem:[%s895 + $0x1c] sm:$0xf]
    %v904 = vld [vmem:[%s895 + $0x20] sm:$0xf]
    %v905 = vld [vmem:[%s895 + $0x24] sm:$0xf]
    %v906 = vld [vmem:[%s895 + $0x28] sm:$0xf]
    %v907 = vld [vmem:[%s895 + $0x2c] sm:$0xf]
    %v908 = vld [vmem:[%s895 + $0x30] sm:$0xf]
    %v909 = vld [vmem:[%s895 + $0x34] sm:$0xf]
    %v910 = vld [vmem:[%s895 + $0x38] sm:$0xf]
    %v911 = vld [vmem:[%s895 + $0x3c] sm:$0xf]
    %v928 = vunpack.c.l.b16 %v896
    %v929 = vunpack.c.l.b16 %v897
    %v930 = vunpack.c.l.b16 %v898
    %v931 = vunpack.c.l.b16 %v899
    %v932 = vunpack.c.l.b16 %v900
    %v933 = vunpack.c.l.b16 %v901
    %v934 = vunpack.c.l.b16 %v902
    %v935 = vunpack.c.l.b16 %v903
    %v936 = vunpack.c.l.b16 %v904
    %v937 = vunpack.c.l.b16 %v905
    %v938 = vunpack.c.l.b16 %v906
    %v939 = vunpack.c.l.b16 %v907
    %v940 = vunpack.c.l.b16 %v908
    %v941 = vunpack.c.l.b16 %v909
    %v942 = vunpack.c.l.b16 %v910
    %v943 = vunpack.c.l.b16 %v911
    %v944 = vpack.c.b16 %v929, %v928
    %v945 = vpack.c.b16 %v931, %v930
    %v946 = vpack.c.b16 %v933, %v932
    %v947 = vpack.c.b16 %v935, %v934
    %v948 = vpack.c.b16 %v937, %v936
    %v949 = vpack.c.b16 %v939, %v938
    %v950 = vpack.c.b16 %v941, %v940
    %v951 = vpack.c.b16 %v943, %v942
    %960 = vmatprep.subr.bf16.mxu0 0
    %961 = vmatpush1.bf16.msra.mxu0 %v944
    %962 = vmatprep.subr.bf16.mxu0 0
    %963 = vmatpush1.bf16.msra.mxu0 %v945
    %964 = vmatprep.subr.bf16.mxu0 0
    %965 = vmatpush1.bf16.msra.mxu0 %v946
    %966 = vmatprep.subr.bf16.mxu0 0
    %967 = vmatpush1.bf16.msra.mxu0 %v947
    %968 = vmatprep.subr.bf16.mxu0 0
    %969 = vmatpush1.bf16.msra.mxu0 %v948
    %970 = vmatprep.subr.bf16.mxu0 0
    %971 = vmatpush1.bf16.msra.mxu0 %v949
    %972 = vmatprep.subr.bf16.mxu0 0
    %973 = vmatpush1.bf16.msra.mxu0 %v950
    %974 = vmatprep.subr.bf16.mxu0 0
    %975 = vmatpush1.bf16.msra.mxu0 %v951
    %976 = vmatprep.subr.bf16.mxu0 0
    %977 = vmatpush1.bf16.msra.mxu0 0
    %978 = vmatprep.subr.bf16.mxu0 0
    %979 = vmatpush1.bf16.msra.mxu0 0
    %980 = vmatprep.subr.bf16.mxu0 0
    %981 = vmatpush1.bf16.msra.mxu0 0
    %982 = vmatprep.subr.bf16.mxu0 0
    %983 = vmatpush1.bf16.msra.mxu0 0
    %984 = vmatprep.subr.bf16.mxu0 0
    %985 = vmatpush1.bf16.msra.mxu0 0
    %986 = vmatprep.subr.bf16.mxu0 0
    %987 = vmatpush1.bf16.msra.mxu0 0
    %988 = vmatprep.subr.bf16.mxu0 0
    %989 = vmatpush1.bf16.msra.mxu0 0
    %990 = vmatprep.subr.bf16.mxu0 0
    %991 = vmatpush1.bf16.msra.mxu0 0
    %992 = vmatprep.mubr.bf16.mxu0 0
    %993 = vmatmul.mubr.bf16.gmra.mrb[0].mxu0 %v894
    %v994 = vpop.f32.mrb[0].mxu0
    %v995 = vadd.f32 0.0, %v994
    %v996 = vpop.f32.mrb[0].mxu0
    %v997 = vpop.f32.mrb[0].mxu0
    %v998 = vpop.f32.mrb[0].mxu0
    %999 = vdwg.mxu0
    %v1000 = vadd.f32 %v893, %v995
    %v1001 = vmul.f32 %v783, 2.0
    %v1002 = vmul.f32 %v1001, %v786
    %v1003 = vmul.f32 %v786, %v786
    %v1004 = vmul.f32 %v783, %v783
    %v1005 = vsub.f32 %v1003, %v1004
    %v1006 = vpack.c.bf16 %v1002, %v1002
    %s1007 = scalar_lea.vmem [#allocation2], 448
    %v1008 = vld [vmem:[%s1007] sm:$0xf]
    %v1009 = vld [vmem:[%s1007 + $0x4] sm:$0xf]
    %v1010 = vld [vmem:[%s1007 + $0x8] sm:$0xf]
    %v1011 = vld [vmem:[%s1007 + $0xc] sm:$0xf]
    %v1012 = vld [vmem:[%s1007 + $0x10] sm:$0xf]
    %v1013 = vld [vmem:[%s1007 + $0x14] sm:$0xf]
    %v1014 = vld [vmem:[%s1007 + $0x18] sm:$0xf]
    %v1015 = vld [vmem:[%s1007 + $0x1c] sm:$0xf]
    %v1016 = vld [vmem:[%s1007 + $0x20] sm:$0xf]
    %v1017 = vld [vmem:[%s1007 + $0x24] sm:$0xf]
    %v1018 = vld [vmem:[%s1007 + $0x28] sm:$0xf]
    %v1019 = vld [vmem:[%s1007 + $0x2c] sm:$0xf]
    %v1020 = vld [vmem:[%s1007 + $0x30] sm:$0xf]
    %v1021 = vld [vmem:[%s1007 + $0x34] sm:$0xf]
    %v1022 = vld [vmem:[%s1007 + $0x38] sm:$0xf]
    %v1023 = vld [vmem:[%s1007 + $0x3c] sm:$0xf]
    %v1040 = vunpack.c.l.b16 %v1008
    %v1041 = vunpack.c.l.b16 %v1009
    %v1042 = vunpack.c.l.b16 %v1010
    %v1043 = vunpack.c.l.b16 %v1011
    %v1044 = vunpack.c.l.b16 %v1012
    %v1045 = vunpack.c.l.b16 %v1013
    %v1046 = vunpack.c.l.b16 %v1014
    %v1047 = vunpack.c.l.b16 %v1015
    %v1048 = vunpack.c.l.b16 %v1016
    %v1049 = vunpack.c.l.b16 %v1017
    %v1050 = vunpack.c.l.b16 %v1018
    %v1051 = vunpack.c.l.b16 %v1019
    %v1052 = vunpack.c.l.b16 %v1020
    %v1053 = vunpack.c.l.b16 %v1021
    %v1054 = vunpack.c.l.b16 %v1022
    %v1055 = vunpack.c.l.b16 %v1023
    %v1056 = vpack.c.b16 %v1041, %v1040
    %v1057 = vpack.c.b16 %v1043, %v1042
    %v1058 = vpack.c.b16 %v1045, %v1044
    %v1059 = vpack.c.b16 %v1047, %v1046
    %v1060 = vpack.c.b16 %v1049, %v1048
    %v1061 = vpack.c.b16 %v1051, %v1050
    %v1062 = vpack.c.b16 %v1053, %v1052
    %v1063 = vpack.c.b16 %v1055, %v1054
    %1072 = vmatprep.subr.bf16.mxu0 0
    %1073 = vmatpush1.bf16.msra.mxu0 %v1056
    %1074 = vmatprep.subr.bf16.mxu0 0
    %1075 = vmatpush1.bf16.msra.mxu0 %v1057
    %1076 = vmatprep.subr.bf16.mxu0 0
    %1077 = vmatpush1.bf16.msra.mxu0 %v1058
    %1078 = vmatprep.subr.bf16.mxu0 0
    %1079 = vmatpush1.bf16.msra.mxu0 %v1059
    %1080 = vmatprep.subr.bf16.mxu0 0
    %1081 = vmatpush1.bf16.msra.mxu0 %v1060
    %1082 = vmatprep.subr.bf16.mxu0 0
    %1083 = vmatpush1.bf16.msra.mxu0 %v1061
    %1084 = vmatprep.subr.bf16.mxu0 0
    %1085 = vmatpush1.bf16.msra.mxu0 %v1062
    %1086 = vmatprep.subr.bf16.mxu0 0
    %1087 = vmatpush1.bf16.msra.mxu0 %v1063
    %1088 = vmatprep.subr.bf16.mxu0 0
    %1089 = vmatpush1.bf16.msra.mxu0 0
    %1090 = vmatprep.subr.bf16.mxu0 0
    %1091 = vmatpush1.bf16.msra.mxu0 0
    %1092 = vmatprep.subr.bf16.mxu0 0
    %1093 = vmatpush1.bf16.msra.mxu0 0
    %1094 = vmatprep.subr.bf16.mxu0 0
    %1095 = vmatpush1.bf16.msra.mxu0 0
    %1096 = vmatprep.subr.bf16.mxu0 0
    %1097 = vmatpush1.bf16.msra.mxu0 0
    %1098 = vmatprep.subr.bf16.mxu0 0
    %1099 = vmatpush1.bf16.msra.mxu0 0
    %1100 = vmatprep.subr.bf16.mxu0 0
    %1101 = vmatpush1.bf16.msra.mxu0 0
    %1102 = vmatprep.subr.bf16.mxu0 0
    %1103 = vmatpush1.bf16.msra.mxu0 0
    %1104 = vmatprep.mubr.bf16.mxu0 0
    %1105 = vmatmul.mubr.bf16.gmra.mrb[0].mxu0 %v1006
    %v1106 = vpop.f32.mrb[0].mxu0
    %v1107 = vadd.f32 0.0, %v1106
    %v1108 = vpop.f32.mrb[0].mxu0
    %v1109 = vpop.f32.mrb[0].mxu0
    %v1110 = vpop.f32.mrb[0].mxu0
    %1111 = vdwg.mxu0
    %v1112 = vadd.f32 %v1000, %v1107
    %v1113 = vpack.c.bf16 %v1005, %v1005
    %s1114 = scalar_lea.vmem [#allocation2], 512
    %v1115 = vld [vmem:[%s1114] sm:$0xf]
    %v1116 = vld [vmem:[%s1114 + $0x4] sm:$0xf]
    %v1117 = vld [vmem:[%s1114 + $0x8] sm:$0xf]
    %v1118 = vld [vmem:[%s1114 + $0xc] sm:$0xf]
    %v1119 = vld [vmem:[%s1114 + $0x10] sm:$0xf]
    %v1120 = vld [vmem:[%s1114 + $0x14] sm:$0xf]
    %v1121 = vld [vmem:[%s1114 + $0x18] sm:$0xf]
    %v1122 = vld [vmem:[%s1114 + $0x1c] sm:$0xf]
    %v1123 = vld [vmem:[%s1114 + $0x20] sm:$0xf]
    %v1124 = vld [vmem:[%s1114 + $0x24] sm:$0xf]
    %v1125 = vld [vmem:[%s1114 + $0x28] sm:$0xf]
    %v1126 = vld [vmem:[%s1114 + $0x2c] sm:$0xf]
    %v1127 = vld [vmem:[%s1114 + $0x30] sm:$0xf]
    %v1128 = vld [vmem:[%s1114 + $0x34] sm:$0xf]
    %v1129 = vld [vmem:[%s1114 + $0x38] sm:$0xf]
    %v1130 = vld [vmem:[%s1114 + $0x3c] sm:$0xf]
    %v1147 = vunpack.c.l.b16 %v1115
    %v1148 = vunpack.c.l.b16 %v1116
    %v1149 = vunpack.c.l.b16 %v1117
    %v1150 = vunpack.c.l.b16 %v1118
    %v1151 = vunpack.c.l.b16 %v1119
    %v1152 = vunpack.c.l.b16 %v1120
    %v1153 = vunpack.c.l.b16 %v1121
    %v1154 = vunpack.c.l.b16 %v1122
    %v1155 = vunpack.c.l.b16 %v1123
    %v1156 = vunpack.c.l.b16 %v1124
    %v1157 = vunpack.c.l.b16 %v1125
    %v1158 = vunpack.c.l.b16 %v1126
    %v1159 = vunpack.c.l.b16 %v1127
    %v1160 = vunpack.c.l.b16 %v1128
    %v1161 = vunpack.c.l.b16 %v1129
    %v1162 = vunpack.c.l.b16 %v1130
    %v1163 = vpack.c.b16 %v1148, %v1147
    %v1164 = vpack.c.b16 %v1150, %v1149
    %v1165 = vpack.c.b16 %v1152, %v1151
    %v1166 = vpack.c.b16 %v1154, %v1153
    %v1167 = vpack.c.b16 %v1156, %v1155
    %v1168 = vpack.c.b16 %v1158, %v1157
    %v1169 = vpack.c.b16 %v1160, %v1159
    %v1170 = vpack.c.b16 %v1162, %v1161
    %1179 = vmatprep.subr.bf16.mxu0 0
    %1180 = vmatpush1.bf16.msra.mxu0 %v1163
    %1181 = vmatprep.subr.bf16.mxu0 0
    %1182 = vmatpush1.bf16.msra.mxu0 %v1164
    %1183 = vmatprep.subr.bf16.mxu0 0
    %1184 = vmatpush1.bf16.msra.mxu0 %v1165
    %1185 = vmatprep.subr.bf16.mxu0 0
    %1186 = vmatpush1.bf16.msra.mxu0 %v1166
    %1187 = vmatprep.subr.bf16.mxu0 0
    %1188 = vmatpush1.bf16.msra.mxu0 %v1167
    %1189 = vmatprep.subr.bf16.mxu0 0
    %1190 = vmatpush1.bf16.msra.mxu0 %v1168
    %1191 = vmatprep.subr.bf16.mxu0 0
    %1192 = vmatpush1.bf16.msra.mxu0 %v1169
    %1193 = vmatprep.subr.bf16.mxu0 0
    %1194 = vmatpush1.bf16.msra.mxu0 %v1170
    %1195 = vmatprep.subr.bf16.mxu0 0
    %1196 = vmatpush1.bf16.msra.mxu0 0
    %1197 = vmatprep.subr.bf16.mxu0 0
    %1198 = vmatpush1.bf16.msra.mxu0 0
    %1199 = vmatprep.subr.bf16.mxu0 0
    %1200 = vmatpush1.bf16.msra.mxu0 0
    %1201 = vmatprep.subr.bf16.mxu0 0
    %1202 = vmatpush1.bf16.msra.mxu0 0
    %1203 = vmatprep.subr.bf16.mxu0 0
    %1204 = vmatpush1.bf16.msra.mxu0 0
    %1205 = vmatprep.subr.bf16.mxu0 0
    %1206 = vmatpush1.bf16.msra.mxu0 0
    %1207 = vmatprep.subr.bf16.mxu0 0
    %1208 = vmatpush1.bf16.msra.mxu0 0
    %1209 = vmatprep.subr.bf16.mxu0 0
    %1210 = vmatpush1.bf16.msra.mxu0 0
    %1211 = vmatprep.mubr.bf16.mxu0 0
    %1212 = vmatmul.mubr.bf16.gmra.mrb[0].mxu0 %v1113
    %v1213 = vpop.f32.mrb[0].mxu0
    %v1214 = vadd.f32 0.0, %v1213
    %v1215 = vpop.f32.mrb[0].mxu0
    %v1216 = vpop.f32.mrb[0].mxu0
    %v1217 = vpop.f32.mrb[0].mxu0
    %1218 = vdwg.mxu0
    %v1219 = vadd.f32 %v1112, %v1214
    %v1220 = vmul.f32 %v1002, 2.0
    %v1221 = vmul.f32 %v1220, %v1005
    %v1222 = vmul.f32 %v1005, %v1005
    %v1223 = vmul.f32 %v1002, %v1002
    %v1224 = vsub.f32 %v1222, %v1223
    %v1225 = vpack.c.bf16 %v1221, %v1221
    %s1226 = scalar_lea.vmem [#allocation2], 576
    %v1227 = vld [vmem:[%s1226] sm:$0xf]
    %v1228 = vld [vmem:[%s1226 + $0x4] sm:$0xf]
    %v1229 = vld [vmem:[%s1226 + $0x8] sm:$0xf]
    %v1230 = vld [vmem:[%s1226 + $0xc] sm:$0xf]
    %v1231 = vld [vmem:[%s1226 + $0x10] sm:$0xf]
    %v1232 = vld [vmem:[%s1226 + $0x14] sm:$0xf]
    %v1233 = vld [vmem:[%s1226 + $0x18] sm:$0xf]
    %v1234 = vld [vmem:[%s1226 + $0x1c] sm:$0xf]
    %v1235 = vld [vmem:[%s1226 + $0x20] sm:$0xf]
    %v1236 = vld [vmem:[%s1226 + $0x24] sm:$0xf]
    %v1237 = vld [vmem:[%s1226 + $0x28] sm:$0xf]
    %v1238 = vld [vmem:[%s1226 + $0x2c] sm:$0xf]
    %v1239 = vld [vmem:[%s1226 + $0x30] sm:$0xf]
    %v1240 = vld [vmem:[%s1226 + $0x34] sm:$0xf]
    %v1241 = vld [vmem:[%s1226 + $0x38] sm:$0xf]
    %v1242 = vld [vmem:[%s1226 + $0x3c] sm:$0xf]
    %v1259 = vunpack.c.l.b16 %v1227
    %v1260 = vunpack.c.l.b16 %v1228
    %v1261 = vunpack.c.l.b16 %v1229
    %v1262 = vunpack.c.l.b16 %v1230
    %v1263 = vunpack.c.l.b16 %v1231
    %v1264 = vunpack.c.l.b16 %v1232
    %v1265 = vunpack.c.l.b16 %v1233
    %v1266 = vunpack.c.l.b16 %v1234
    %v1267 = vunpack.c.l.b16 %v1235
    %v1268 = vunpack.c.l.b16 %v1236
    %v1269 = vunpack.c.l.b16 %v1237
    %v1270 = vunpack.c.l.b16 %v1238
    %v1271 = vunpack.c.l.b16 %v1239
    %v1272 = vunpack.c.l.b16 %v1240
    %v1273 = vunpack.c.l.b16 %v1241
    %v1274 = vunpack.c.l.b16 %v1242
    %v1275 = vpack.c.b16 %v1260, %v1259
    %v1276 = vpack.c.b16 %v1262, %v1261
    %v1277 = vpack.c.b16 %v1264, %v1263
    %v1278 = vpack.c.b16 %v1266, %v1265
    %v1279 = vpack.c.b16 %v1268, %v1267
    %v1280 = vpack.c.b16 %v1270, %v1269
    %v1281 = vpack.c.b16 %v1272, %v1271
    %v1282 = vpack.c.b16 %v1274, %v1273
    %1291 = vmatprep.subr.bf16.mxu0 0
    %1292 = vmatpush1.bf16.msra.mxu0 %v1275
    %1293 = vmatprep.subr.bf16.mxu0 0
    %1294 = vmatpush1.bf16.msra.mxu0 %v1276
    %1295 = vmatprep.subr.bf16.mxu0 0
    %1296 = vmatpush1.bf16.msra.mxu0 %v1277
    %1297 = vmatprep.subr.bf16.mxu0 0
    %1298 = vmatpush1.bf16.msra.mxu0 %v1278
    %1299 = vmatprep.subr.bf16.mxu0 0
    %1300 = vmatpush1.bf16.msra.mxu0 %v1279
    %1301 = vmatprep.subr.bf16.mxu0 0
    %1302 = vmatpush1.bf16.msra.mxu0 %v1280
    %1303 = vmatprep.subr.bf16.mxu0 0
    %1304 = vmatpush1.bf16.msra.mxu0 %v1281
    %1305 = vmatprep.subr.bf16.mxu0 0
    %1306 = vmatpush1.bf16.msra.mxu0 %v1282
    %1307 = vmatprep.subr.bf16.mxu0 0
    %1308 = vmatpush1.bf16.msra.mxu0 0
    %1309 = vmatprep.subr.bf16.mxu0 0
    %1310 = vmatpush1.bf16.msra.mxu0 0
    %1311 = vmatprep.subr.bf16.mxu0 0
    %1312 = vmatpush1.bf16.msra.mxu0 0
    %1313 = vmatprep.subr.bf16.mxu0 0
    %1314 = vmatpush1.bf16.msra.mxu0 0
    %1315 = vmatprep.subr.bf16.mxu0 0
    %1316 = vmatpush1.bf16.msra.mxu0 0
    %1317 = vmatprep.subr.bf16.mxu0 0
    %1318 = vmatpush1.bf16.msra.mxu0 0
    %1319 = vmatprep.subr.bf16.mxu0 0
    %1320 = vmatpush1.bf16.msra.mxu0 0
    %1321 = vmatprep.subr.bf16.mxu0 0
    %1322 = vmatpush1.bf16.msra.mxu0 0
    %1323 = vmatprep.mubr.bf16.mxu0 0
    %1324 = vmatmul.mubr.bf16.gmra.mrb[0].mxu0 %v1225
    %v1325 = vpop.f32.mrb[0].mxu0
    %v1326 = vadd.f32 0.0, %v1325
    %v1327 = vpop.f32.mrb[0].mxu0
    %v1328 = vpop.f32.mrb[0].mxu0
    %v1329 = vpop.f32.mrb[0].mxu0
    %1330 = vdwg.mxu0
    %v1331 = vadd.f32 %v1219, %v1326
    %v1332 = vpack.c.bf16 %v1224, %v1224
    %s1333 = scalar_lea.vmem [#allocation2], 640
    %v1334 = vld [vmem:[%s1333] sm:$0xf]
    %v1335 = vld [vmem:[%s1333 + $0x4] sm:$0xf]
    %v1336 = vld [vmem:[%s1333 + $0x8] sm:$0xf]
    %v1337 = vld [vmem:[%s1333 + $0xc] sm:$0xf]
    %v1338 = vld [vmem:[%s1333 + $0x10] sm:$0xf]
    %v1339 = vld [vmem:[%s1333 + $0x14] sm:$0xf]
    %v1340 = vld [vmem:[%s1333 + $0x18] sm:$0xf]
    %v1341 = vld [vmem:[%s1333 + $0x1c] sm:$0xf]
    %v1342 = vld [vmem:[%s1333 + $0x20] sm:$0xf]
    %v1343 = vld [vmem:[%s1333 + $0x24] sm:$0xf]
    %v1344 = vld [vmem:[%s1333 + $0x28] sm:$0xf]
    %v1345 = vld [vmem:[%s1333 + $0x2c] sm:$0xf]
    %v1346 = vld [vmem:[%s1333 + $0x30] sm:$0xf]
    %v1347 = vld [vmem:[%s1333 + $0x34] sm:$0xf]
    %v1348 = vld [vmem:[%s1333 + $0x38] sm:$0xf]
    %v1349 = vld [vmem:[%s1333 + $0x3c] sm:$0xf]
    %v1366 = vunpack.c.l.b16 %v1334
    %v1367 = vunpack.c.l.b16 %v1335
    %v1368 = vunpack.c.l.b16 %v1336
    %v1369 = vunpack.c.l.b16 %v1337
    %v1370 = vunpack.c.l.b16 %v1338
    %v1371 = vunpack.c.l.b16 %v1339
    %v1372 = vunpack.c.l.b16 %v1340
    %v1373 = vunpack.c.l.b16 %v1341
    %v1374 = vunpack.c.l.b16 %v1342
    %v1375 = vunpack.c.l.b16 %v1343
    %v1376 = vunpack.c.l.b16 %v1344
    %v1377 = vunpack.c.l.b16 %v1345
    %v1378 = vunpack.c.l.b16 %v1346
    %v1379 = vunpack.c.l.b16 %v1347
    %v1380 = vunpack.c.l.b16 %v1348
    %v1381 = vunpack.c.l.b16 %v1349
    %v1382 = vpack.c.b16 %v1367, %v1366
    %v1383 = vpack.c.b16 %v1369, %v1368
    %v1384 = vpack.c.b16 %v1371, %v1370
    %v1385 = vpack.c.b16 %v1373, %v1372
    %v1386 = vpack.c.b16 %v1375, %v1374
    %v1387 = vpack.c.b16 %v1377, %v1376
    %v1388 = vpack.c.b16 %v1379, %v1378
    %v1389 = vpack.c.b16 %v1381, %v1380
    %1398 = vmatprep.subr.bf16.mxu0 0
    %1399 = vmatpush1.bf16.msra.mxu0 %v1382
    %1400 = vmatprep.subr.bf16.mxu0 0
    %1401 = vmatpush1.bf16.msra.mxu0 %v1383
    %1402 = vmatprep.subr.bf16.mxu0 0
    %1403 = vmatpush1.bf16.msra.mxu0 %v1384
    %1404 = vmatprep.subr.bf16.mxu0 0
    %1405 = vmatpush1.bf16.msra.mxu0 %v1385
    %1406 = vmatprep.subr.bf16.mxu0 0
    %1407 = vmatpush1.bf16.msra.mxu0 %v1386
    %1408 = vmatprep.subr.bf16.mxu0 0
    %1409 = vmatpush1.bf16.msra.mxu0 %v1387
    %1410 = vmatprep.subr.bf16.mxu0 0
    %1411 = vmatpush1.bf16.msra.mxu0 %v1388
    %1412 = vmatprep.subr.bf16.mxu0 0
    %1413 = vmatpush1.bf16.msra.mxu0 %v1389
    %1414 = vmatprep.subr.bf16.mxu0 0
    %1415 = vmatpush1.bf16.msra.mxu0 0
    %1416 = vmatprep.subr.bf16.mxu0 0
    %1417 = vmatpush1.bf16.msra.mxu0 0
    %1418 = vmatprep.subr.bf16.mxu0 0
    %1419 = vmatpush1.bf16.msra.mxu0 0
    %1420 = vmatprep.subr.bf16.mxu0 0
    %1421 = vmatpush1.bf16.msra.mxu0 0
    %1422 = vmatprep.subr.bf16.mxu0 0
    %1423 = vmatpush1.bf16.msra.mxu0 0
    %1424 = vmatprep.subr.bf16.mxu0 0
    %1425 = vmatpush1.bf16.msra.mxu0 0
    %1426 = vmatprep.subr.bf16.mxu0 0
    %1427 = vmatpush1.bf16.msra.mxu0 0
    %1428 = vmatprep.subr.bf16.mxu0 0
    %1429 = vmatpush1.bf16.msra.mxu0 0
    %1430 = vmatprep.mubr.bf16.mxu0 0
    %1431 = vmatmul.mubr.bf16.gmra.mrb[0].mxu0 %v1332
    %v1432 = vpop.f32.mrb[0].mxu0
    %v1433 = vadd.f32 0.0, %v1432
    %v1434 = vpop.f32.mrb[0].mxu0
    %v1435 = vpop.f32.mrb[0].mxu0
    %v1436 = vpop.f32.mrb[0].mxu0
    %1437 = vdwg.mxu0
    %v1438 = vadd.f32 %v1331, %v1433
    %v1439 = vmul.f32 %v1221, 2.0
    %v1440 = vmul.f32 %v1439, %v1224
    %v1441 = vmul.f32 %v1224, %v1224
    %v1442 = vmul.f32 %v1221, %v1221
    %v1443 = vsub.f32 %v1441, %v1442
    %v1444 = vpack.c.bf16 %v1440, %v1440
    %s1445 = scalar_lea.vmem [#allocation2], 704
    %v1446 = vld [vmem:[%s1445] sm:$0xf]
    %v1447 = vld [vmem:[%s1445 + $0x4] sm:$0xf]
    %v1448 = vld [vmem:[%s1445 + $0x8] sm:$0xf]
    %v1449 = vld [vmem:[%s1445 + $0xc] sm:$0xf]
    %v1450 = vld [vmem:[%s1445 + $0x10] sm:$0xf]
    %v1451 = vld [vmem:[%s1445 + $0x14] sm:$0xf]
    %v1452 = vld [vmem:[%s1445 + $0x18] sm:$0xf]
    %v1453 = vld [vmem:[%s1445 + $0x1c] sm:$0xf]
    %v1454 = vld [vmem:[%s1445 + $0x20] sm:$0xf]
    %v1455 = vld [vmem:[%s1445 + $0x24] sm:$0xf]
    %v1456 = vld [vmem:[%s1445 + $0x28] sm:$0xf]
    %v1457 = vld [vmem:[%s1445 + $0x2c] sm:$0xf]
    %v1458 = vld [vmem:[%s1445 + $0x30] sm:$0xf]
    %v1459 = vld [vmem:[%s1445 + $0x34] sm:$0xf]
    %v1460 = vld [vmem:[%s1445 + $0x38] sm:$0xf]
    %v1461 = vld [vmem:[%s1445 + $0x3c] sm:$0xf]
    %v1478 = vunpack.c.l.b16 %v1446
    %v1479 = vunpack.c.l.b16 %v1447
    %v1480 = vunpack.c.l.b16 %v1448
    %v1481 = vunpack.c.l.b16 %v1449
    %v1482 = vunpack.c.l.b16 %v1450
    %v1483 = vunpack.c.l.b16 %v1451
    %v1484 = vunpack.c.l.b16 %v1452
    %v1485 = vunpack.c.l.b16 %v1453
    %v1486 = vunpack.c.l.b16 %v1454
    %v1487 = vunpack.c.l.b16 %v1455
    %v1488 = vunpack.c.l.b16 %v1456
    %v1489 = vunpack.c.l.b16 %v1457
    %v1490 = vunpack.c.l.b16 %v1458
    %v1491 = vunpack.c.l.b16 %v1459
    %v1492 = vunpack.c.l.b16 %v1460
    %v1493 = vunpack.c.l.b16 %v1461
    %v1494 = vpack.c.b16 %v1479, %v1478
    %v1495 = vpack.c.b16 %v1481, %v1480
    %v1496 = vpack.c.b16 %v1483, %v1482
    %v1497 = vpack.c.b16 %v1485, %v1484
    %v1498 = vpack.c.b16 %v1487, %v1486
    %v1499 = vpack.c.b16 %v1489, %v1488
    %v1500 = vpack.c.b16 %v1491, %v1490
    %v1501 = vpack.c.b16 %v1493, %v1492
    %1510 = vmatprep.subr.bf16.mxu0 0
    %1511 = vmatpush1.bf16.msra.mxu0 %v1494
    %1512 = vmatprep.subr.bf16.mxu0 0
    %1513 = vmatpush1.bf16.msra.mxu0 %v1495
    %1514 = vmatprep.subr.bf16.mxu0 0
    %1515 = vmatpush1.bf16.msra.mxu0 %v1496
    %1516 = vmatprep.subr.bf16.mxu0 0
    %1517 = vmatpush1.bf16.msra.mxu0 %v1497
    %1518 = vmatprep.subr.bf16.mxu0 0
    %1519 = vmatpush1.bf16.msra.mxu0 %v1498
    %1520 = vmatprep.subr.bf16.mxu0 0
    %1521 = vmatpush1.bf16.msra.mxu0 %v1499
    %1522 = vmatprep.subr.bf16.mxu0 0
    %1523 = vmatpush1.bf16.msra.mxu0 %v1500
    %1524 = vmatprep.subr.bf16.mxu0 0
    %1525 = vmatpush1.bf16.msra.mxu0 %v1501
    %1526 = vmatprep.subr.bf16.mxu0 0
    %1527 = vmatpush1.bf16.msra.mxu0 0
    %1528 = vmatprep.subr.bf16.mxu0 0
    %1529 = vmatpush1.bf16.msra.mxu0 0
    %1530 = vmatprep.subr.bf16.mxu0 0
    %1531 = vmatpush1.bf16.msra.mxu0 0
    %1532 = vmatprep.subr.bf16.mxu0 0
    %1533 = vmatpush1.bf16.msra.mxu0 0
    %1534 = vmatprep.subr.bf16.mxu0 0
    %1535 = vmatpush1.bf16.msra.mxu0 0
    %1536 = vmatprep.subr.bf16.mxu0 0
    %1537 = vmatpush1.bf16.msra.mxu0 0
    %1538 = vmatprep.subr.bf16.mxu0 0
    %1539 = vmatpush1.bf16.msra.mxu0 0
    %1540 = vmatprep.subr.bf16.mxu0 0
    %1541 = vmatpush1.bf16.msra.mxu0 0
    %1542 = vmatprep.mubr.bf16.mxu0 0
    %1543 = vmatmul.mubr.bf16.gmra.mrb[0].mxu0 %v1444
    %v1544 = vpop.f32.mrb[0].mxu0
    %v1545 = vadd.f32 0.0, %v1544
    %v1546 = vpop.f32.mrb[0].mxu0
    %v1547 = vpop.f32.mrb[0].mxu0
    %v1548 = vpop.f32.mrb[0].mxu0
    %1549 = vdwg.mxu0
    %v1550 = vadd.f32 %v1438, %v1545
    %v1551 = vpack.c.bf16 %v1443, %v1443
    %s1552 = scalar_lea.vmem [#allocation2], 768
    %v1553 = vld [vmem:[%s1552] sm:$0xf]
    %v1554 = vld [vmem:[%s1552 + $0x4] sm:$0xf]
    %v1555 = vld [vmem:[%s1552 + $0x8] sm:$0xf]
    %v1556 = vld [vmem:[%s1552 + $0xc] sm:$0xf]
    %v1557 = vld [vmem:[%s1552 + $0x10] sm:$0xf]
    %v1558 = vld [vmem:[%s1552 + $0x14] sm:$0xf]
    %v1559 = vld [vmem:[%s1552 + $0x18] sm:$0xf]
    %v1560 = vld [vmem:[%s1552 + $0x1c] sm:$0xf]
    %v1561 = vld [vmem:[%s1552 + $0x20] sm:$0xf]
    %v1562 = vld [vmem:[%s1552 + $0x24] sm:$0xf]
    %v1563 = vld [vmem:[%s1552 + $0x28] sm:$0xf]
    %v1564 = vld [vmem:[%s1552 + $0x2c] sm:$0xf]
    %v1565 = vld [vmem:[%s1552 + $0x30] sm:$0xf]
    %v1566 = vld [vmem:[%s1552 + $0x34] sm:$0xf]
    %v1567 = vld [vmem:[%s1552 + $0x38] sm:$0xf]
    %v1568 = vld [vmem:[%s1552 + $0x3c] sm:$0xf]
    %v1585 = vunpack.c.l.b16 %v1553
    %v1586 = vunpack.c.l.b16 %v1554
    %v1587 = vunpack.c.l.b16 %v1555
    %v1588 = vunpack.c.l.b16 %v1556
    %v1589 = vunpack.c.l.b16 %v1557
    %v1590 = vunpack.c.l.b16 %v1558
    %v1591 = vunpack.c.l.b16 %v1559
    %v1592 = vunpack.c.l.b16 %v1560
    %v1593 = vunpack.c.l.b16 %v1561
    %v1594 = vunpack.c.l.b16 %v1562
    %v1595 = vunpack.c.l.b16 %v1563
    %v1596 = vunpack.c.l.b16 %v1564
    %v1597 = vunpack.c.l.b16 %v1565
    %v1598 = vunpack.c.l.b16 %v1566
    %v1599 = vunpack.c.l.b16 %v1567
    %v1600 = vunpack.c.l.b16 %v1568
    %v1601 = vpack.c.b16 %v1586, %v1585
    %v1602 = vpack.c.b16 %v1588, %v1587
    %v1603 = vpack.c.b16 %v1590, %v1589
    %v1604 = vpack.c.b16 %v1592, %v1591
    %v1605 = vpack.c.b16 %v1594, %v1593
    %v1606 = vpack.c.b16 %v1596, %v1595
    %v1607 = vpack.c.b16 %v1598, %v1597
    %v1608 = vpack.c.b16 %v1600, %v1599
    %1617 = vmatprep.subr.bf16.mxu0 0
    %1618 = vmatpush1.bf16.msra.mxu0 %v1601
    %1619 = vmatprep.subr.bf16.mxu0 0
    %1620 = vmatpush1.bf16.msra.mxu0 %v1602
    %1621 = vmatprep.subr.bf16.mxu0 0
    %1622 = vmatpush1.bf16.msra.mxu0 %v1603
    %1623 = vmatprep.subr.bf16.mxu0 0
    %1624 = vmatpush1.bf16.msra.mxu0 %v1604
    %1625 = vmatprep.subr.bf16.mxu0 0
    %1626 = vmatpush1.bf16.msra.mxu0 %v1605
    %1627 = vmatprep.subr.bf16.mxu0 0
    %1628 = vmatpush1.bf16.msra.mxu0 %v1606
    %1629 = vmatprep.subr.bf16.mxu0 0
    %1630 = vmatpush1.bf16.msra.mxu0 %v1607
    %1631 = vmatprep.subr.bf16.mxu0 0
    %1632 = vmatpush1.bf16.msra.mxu0 %v1608
    %1633 = vmatprep.subr.bf16.mxu0 0
    %1634 = vmatpush1.bf16.msra.mxu0 0
    %1635 = vmatprep.subr.bf16.mxu0 0
    %1636 = vmatpush1.bf16.msra.mxu0 0
    %1637 = vmatprep.subr.bf16.mxu0 0
    %1638 = vmatpush1.bf16.msra.mxu0 0
    %1639 = vmatprep.subr.bf16.mxu0 0
    %1640 = vmatpush1.bf16.msra.mxu0 0
    %1641 = vmatprep.subr.bf16.mxu0 0
    %1642 = vmatpush1.bf16.msra.mxu0 0
    %1643 = vmatprep.subr.bf16.mxu0 0
    %1644 = vmatpush1.bf16.msra.mxu0 0
    %1645 = vmatprep.subr.bf16.mxu0 0
    %1646 = vmatpush1.bf16.msra.mxu0 0
    %1647 = vmatprep.subr.bf16.mxu0 0
    %1648 = vmatpush1.bf16.msra.mxu0 0
    %1649 = vmatprep.mubr.bf16.mxu0 0
    %1650 = vmatmul.mubr.bf16.gmra.mrb[0].mxu0 %v1551
    %v1651 = vpop.f32.mrb[0].mxu0
    %v1652 = vadd.f32 0.0, %v1651
    %v1653 = vpop.f32.mrb[0].mxu0
    %v1654 = vpop.f32.mrb[0].mxu0
    %v1655 = vpop.f32.mrb[0].mxu0
    %1656 = vdwg.mxu0
    %v1657 = vadd.f32 %v1550, %v1652
    %1658 = vst [vmem:[#allocation4] sm:$0xff] %v1657
    // Predicated region
    $region18: #{positional_encoding.1} parent=1 // pred_check
      _
    $region19: #{positional_encoding.1} parent=1 // pred_check_branch
      %1660 = sbr.rel (0) target = $region21
    $region20: #{positional_encoding.1} parent=1 // pred_region
      // Predicated region
      $region22: #{positional_encoding.1} parent=20 // pred_check
        _
      $region23: #{positional_encoding.1} parent=20 // pred_check_branch
        %1662 = sbr.rel (0) target = $region25
      $region24: #{positional_encoding.1} parent=20 // pred_region
        // Predicated region
        $region26: #{positional_encoding.1} parent=24 // pred_check
          _
        $region27: #{positional_encoding.1} parent=24 // pred_check_branch
          %1664 = sbr.rel target = $region29
        $region28: #{positional_encoding.1} parent=24 // pred_region
          // Predicated region
          $region41: #{positional_encoding.1} parent=28 // pred_check
            _
          $region42: #{positional_encoding.1} parent=28 // pred_check_branch
            %1679 = sbr.rel (0) target = $region44
          $region43: #{positional_encoding.1} parent=28 // pred_region
            loop: start=0, step=1, limit=1
            $region45: #{positional_encoding.1} parent=43 // loop_pre_header
              _
            $region46: #{positional_encoding.1} parent=43 // loop_header
              %s1682 = sphi 0, %s1686
              %p1683 = scmp.ge.s32.totalorder %s1682, 1
              %s1687 = sphi [#allocation4], [#allocation4]
              %s1688 = sphi %s3, %s3
            $region47: #{positional_encoding.1} parent=43 // loop_header_branch
              %1685 = sbr.rel (%p1683) target = $region51
            $region48: #{positional_encoding.1} parent=43 // loop_body
              %v1689 = vld [vmem:[%s1687] sm:$0xf]
              %1690 = vst [vmem:[%s1688] sm:$0xf] %v1689
            $region49: #{positional_encoding.1} parent=43 // loop_footer
              %s1686 = sadd.s32 1, %s1682
            $region50: #{positional_encoding.1} parent=43 // loop_footer_branch
              %1681 = sbr.rel target = $region46
            $region51: #{positional_encoding.1} parent=43 // loop_exit
              _
          $region44: #{positional_encoding.1} parent=28 // pred_fallthru
            _
        $region29: #{positional_encoding.1} parent=24 // pred_fallthru
          _
        // Predicated region
        $region30: #{positional_encoding.1} parent=24 // pred_check
          _
        $region31: #{positional_encoding.1} parent=24 // pred_check_branch
          %1666 = sbr.rel (0) target = $region33
        $region32: #{positional_encoding.1} parent=24 // pred_region
          loop: start=0, step=1, limit=1
          $region34: #{positional_encoding.1} parent=32 // loop_pre_header
            _
          $region35: #{positional_encoding.1} parent=32 // loop_header
            %s1669 = sphi 0, %s1673
            %p1670 = scmp.ge.s32.totalorder %s1669, 1
            %s1674 = sphi [#allocation4], [#allocation4]
            %s1675 = sphi %s3, %s3
          $region36: #{positional_encoding.1} parent=32 // loop_header_branch
            %1672 = sbr.rel (%p1670) target = $region40
          $region37: #{positional_encoding.1} parent=32 // loop_body
            %v1676 = vld [vmem:[%s1674] sm:$0xf]
            %1677 = vst [vmem:[%s1675] sm:$0xf] %v1676
          $region38: #{positional_encoding.1} parent=32 // loop_footer
            %s1673 = sadd.s32 1, %s1669
          $region39: #{positional_encoding.1} parent=32 // loop_footer_branch
            %1668 = sbr.rel target = $region35
          $region40: #{positional_encoding.1} parent=32 // loop_exit
            _
        $region33: #{positional_encoding.1} parent=24 // pred_fallthru
          _
      $region25: #{positional_encoding.1} parent=20 // pred_fallthru
        _
      %1691 = vnop
    $region21: #{positional_encoding.1} parent=1 // pred_fallthru
      _
    // Predicated region
    $region52: #{positional_encoding.1} parent=1 // pred_check
      _
    $region53: #{positional_encoding.1} parent=1 // pred_check_branch
      %1693 = sbr.rel (0) target = $region55
    $region54: #{positional_encoding.1} parent=1 // pred_region
      _
    $region55: #{positional_encoding.1} parent=1 // pred_fallthru
      _
    %1694 = vsyncpa [#allocation3], 1

</llo_original>
